<compile_context>
chip_gen: v6e
topology: v6e:2x2x1
jax: 0.10.0
libtpu: 0.0.40
codegen_flags: <defaults>
</compile_context>

<pallas_src>
import functools

import jax
import jax.numpy as jnp
from jax import lax
from jax.experimental import pallas as pl
from jax.experimental.pallas import tpu as pltpu

_BIG = float(jnp.finfo(jnp.float32).max)
_IMAX = int(jnp.iinfo(jnp.int32).max)


def _round_up(x, m):
    return ((x + m - 1) // m) * m


def _knn_topk_kernel(q_ref, pt_ref, pn_ref, out_ref, best_d_ref, best_i_ref,
                     *, K, Kp, block_n):
    # q_ref: (tm, D) query block; pt_ref: (D, tn) pre-transposed candidates
    # (lane-dense); pn_ref: (1, tn) precomputed ||p||^2; out_ref: (tm, Kp) int32.
    j = pl.program_id(1)

    @pl.when(j == 0)
    def _init():
        best_d_ref[...] = jnp.full(best_d_ref.shape, _BIG, jnp.float32)
        best_i_ref[...] = jnp.full(best_i_ref.shape, _IMAX, jnp.int32)

    q = q_ref[...].astype(jnp.float32)          # (tm, D)
    pt = pt_ref[...].astype(jnp.float32)        # (D, tn)
    pn = pn_ref[...]                            # (1, tn) f32
    tm = q.shape[0]
    tn = pt.shape[1]

    # score = ||p||^2 - 2 q.p   (MXU cross term; no operand transpose needed).
    qp = lax.dot_general(q, pt, (((1,), (0,)), ((), ())),
                         preferred_element_type=jnp.float32)        # (tm, tn)
    d = pn - 2.0 * qp

    # Global candidate index as a single lane row; broadcast along sublanes
    # once per grid step when building the merged index matrix.
    gidx_row = j * block_n + lax.broadcasted_iota(jnp.int32, (1, tn), 1)

    # Merge the running best into the streamed tile: one array to reduce /
    # index-recover / remask per pass (halves the cross-lane XLU reductions
    # vs. separate tile/best passes). Indices are already global, so
    # tie-breaking (smallest index) stays correct.
    d_all = jnp.concatenate([d, best_d_ref[...]], axis=-1)                 # (tm, tn+Kp)
    i_all = jnp.concatenate([jnp.broadcast_to(gidx_row, (tm, tn)),
                             best_i_ref[...]], axis=-1)                    # (tm, tn+Kp)

    lane = lax.broadcasted_iota(jnp.int32, (tm, Kp), 1)
    new_d = jnp.full((tm, Kp), _BIG, jnp.float32)
    new_i = jnp.full((tm, Kp), _IMAX, jnp.int32)

    def _select_min(d_cur):
        m = jnp.min(d_cur, axis=-1, keepdims=True)                                   # (tm, 1)
        idx = jnp.min(jnp.where(d_cur == m, i_all, _IMAX), axis=-1, keepdims=True)   # (tm, 1)
        return m, idx

    if K <= 16:
        # Small static K: full unroll; skip the dead remask on the final pass.
        for t in range(K):
            m, idx = _select_min(d_all)
            new_d = jnp.where(lane == t, m, new_d)
            new_i = jnp.where(lane == t, idx, new_i)
            if t < K - 1:
                d_all = jnp.where(i_all == idx, _BIG, d_all)
    else:
        # Large K: visible loop with modest unroll keeps live ranges bounded.
        def body(t, carry):
            d_cur, nd, ni = carry
            m, idx = _select_min(d_cur)
            nd = jnp.where(lane == t, m, nd)
            ni = jnp.where(lane == t, idx, ni)
            d_cur = jnp.where(i_all == idx, _BIG, d_cur)
            return d_cur, nd, ni
        d_all, new_d, new_i = lax.fori_loop(0, K, body, (d_all, new_d, new_i),
                                            unroll=4)

    best_d_ref[...] = new_d
    best_i_ref[...] = new_i

    @pl.when(j == pl.num_programs(1) - 1)
    def _finalize():
        out_ref[...] = new_i


def _pick_block_m(N):
    # Cap at 64 (keeps the (tm, tn+128) score/index tiles near vreg-resident)
    # and aim for >= 2 row blocks so the "parallel" axis can split across both
    # v7x TensorCores; queries are padded to a multiple of block_m.
    half = max(8, _round_up((N + 1) // 2, 8))
    return min(64, half)


def _pick_block_n(N, K):
    # Lane width of the streamed candidate tile: multiple of 128, >= K,
    # capped at 1024 (sweepable). Candidates are padded up to a multiple
    # with ||p||^2 = BIG so padded columns are never selected.
    b = min(1024, _round_up(max(N, 1), 128))
    return max(b, _round_up(K, 128))


def dilated_knn_graph(x, k=9, dilation=1, *, block_m=None, block_n=None):
    """Pallas equivalent of DilatedKnnGraph.forward (non-stochastic path).

    Args:
      x: [N, D] float point coordinates.
    Returns:
      edge_index int32 [2, N*k]: row 0 = neighbor (src) idx, row 1 = center (dst) idx.
    """
    N, D = x.shape
    K = k * dilation
    assert N >= K, "need at least k*dilation points"
    if block_m is None:
        block_m = _pick_block_m(N)
    if block_n is None:
        block_n = _pick_block_n(N, K)
    assert block_m % 8 == 0
    assert block_n % 128 == 0 and block_n >= K

    Kp = _round_up(K, 128)       # lane-dense output / scratch width
    Nq = _round_up(N, block_m)   # padded query rows (padded rows dropped below)
    Nc = _round_up(N, block_n)   # padded candidate columns (masked via ||p||^2 = BIG)

    xf = x.astype(jnp.float32)
    q = jnp.zeros((Nq, D), jnp.float32).at[:N].set(xf)
    # Candidates pre-transposed -> (D, block_n) blocks are lane-dense; no in-kernel transpose.
    xT = jnp.zeros((D, Nc), jnp.float32).at[:, :N].set(xf.T)
    # ||x||^2 hoisted out of the kernel; padded columns get BIG (never selected).
    pn = jnp.full((1, Nc), _BIG, jnp.float32).at[:, :N].set(jnp.sum(xf * xf, axis=-1))

    kernel = functools.partial(_knn_topk_kernel, K=K, Kp=Kp, block_n=block_n)
    nbr = pl.pallas_call(
        kernel,
        out_shape=jax.ShapeDtypeStruct((Nq, Kp), jnp.int32),
        grid_spec=pltpu.PrefetchScalarGridSpec(
            num_scalar_prefetch=0,
            grid=(Nq // block_m, Nc // block_n),
            in_specs=[
                pl.BlockSpec((block_m, D), lambda i, j: (i, 0)),     # query rows
                pl.BlockSpec((D, block_n), lambda i, j: (0, j)),     # candidates^T (streamed)
                pl.BlockSpec((1, block_n), lambda i, j: (0, j)),     # ||p||^2 (streamed)
            ],
            out_specs=pl.BlockSpec((block_m, Kp), lambda i, j: (i, 0)),
            scratch_shapes=[
                pltpu.VMEM((block_m, Kp), jnp.float32),              # running best scores
                pltpu.VMEM((block_m, Kp), jnp.int32),                # running best indices
            ],
        ),
        compiler_params=pltpu.CompilerParams(
            dimension_semantics=("parallel", "arbitrary"),
            vmem_limit_bytes=32 * 1024 * 1024,
        ),
    )(q, xT, pn)                                                     # (Nq, Kp)

    nbr = nbr[:N, :K]                                                # (N, K) sorted neighbor idx
    # Dilated: edge_index[:, ::dilation]  <=>  every dilation-th sorted neighbor per center.
    nbr_d = nbr[:, ::dilation]                                       # (N, k)
    center = jnp.broadcast_to(jnp.arange(N, dtype=jnp.int32)[:, None], (N, k))
    edge_index = jnp.stack([nbr_d.reshape(-1), center.reshape(-1)], axis=0)  # (2, N*k)
    return edge_index


if __name__ == "__main__":
    key = jax.random.PRNGKey(0)
    N, D = 64, 3          # point cloud: 64 points in 3-D
    k, dilation = 4, 2    # k-NN with dilation -> K = 8 candidates, keep 4 per point

    x = jax.random.normal(key, (N, D), dtype=jnp.float32)

    edge_index = dilated_knn_graph(x, k=k, dilation=dilation)
    edge_index = jax.block_until_ready(edge_index)

    # ----- pure-JAX reference check -----
    d_full = jnp.sum((x[:, None, :] - x[None, :, :]) ** 2, axis=-1)             # (N, N)
    ref_order = jnp.argsort(d_full, axis=-1)[:, : k * dilation][:, ::dilation]  # (N, k)
    ref_dst = jnp.repeat(jnp.arange(N, dtype=jnp.int32), k)

    assert edge_index.shape == (2, N * k)
    assert edge_index.dtype == jnp.int32
    # center (dst) indices must match exactly
    assert jnp.array_equal(edge_index[1], ref_dst)
    # nearest neighbor of each point (kept at dilation position 0) is itself
    got_nbr = edge_index[0].reshape(N, k)
    assert jnp.array_equal(got_nbr[:, 0], jnp.arange(N, dtype=jnp.int32))
    # all selected neighbor indices must be valid (no padded-column leakage)
    assert bool(jnp.all((got_nbr >= 0) & (got_nbr < N)))
    # selected neighbor distances must match the reference sorted/dilated distances
    ref_d = jnp.take_along_axis(d_full, ref_order, axis=1)
    got_d = jnp.take_along_axis(d_full, got_nbr.astype(jnp.int32), axis=1)
    assert jnp.allclose(got_d, ref_d, atol=1e-4), (got_d, ref_d)

    print("KERNEL_OK")
</pallas_src>

<mosaic_0001>
module attributes {stable_mosaic.version = 11 : i64} {
  func.func @_knn_topk_kernel(%arg0: i32, %arg1: i32, %arg2: memref<32x3xf32, #tpu.memory_space<vmem>>, %arg3: memref<3x128xf32, #tpu.memory_space<vmem>>, %arg4: memref<1x128xf32, #tpu.memory_space<vmem>>, %arg5: memref<32x128xi32, #tpu.memory_space<vmem>>, %arg6: memref<32x128xf32, #tpu.memory_space<vmem>>, %arg7: memref<32x128xi32, #tpu.memory_space<vmem>>) attributes {dimension_semantics = [#tpu.dimension_semantics<parallel>, #tpu.dimension_semantics<arbitrary>], iteration_bounds = array<i64: 2, 1>, scalar_prefetch = 0 : i64, scratch_operands = 2 : i64, tpu.core_type = #tpu.core_type<tc>, window_params = [{transform_indices = @transform_0, window_bounds = array<i64: 32, 3>}, {transform_indices = @transform_1, window_bounds = array<i64: 3, 128>}, {transform_indices = @transform_2, window_bounds = array<i64: 1, 128>}, {transform_indices = @transform_3, window_bounds = array<i64: 32, 128>}]} {
    %c0_i32 = arith.constant 0 : i32
    %0 = arith.cmpi eq, %arg1, %c0_i32 : i32
    %1 = arith.extui %0 : i1 to i32
    %c0_i32_0 = arith.constant 0 : i32
    %2 = arith.cmpi ne, %1, %c0_i32_0 : i32
    scf.if %2 {
      %cst_58 = arith.constant 3.40282347E+38 : f32
      %201 = vector.broadcast %cst_58 : f32 to vector<32x128xf32>
      %c0_59 = arith.constant 0 : index
      %c0_60 = arith.constant 0 : index
      %202 = vector.load %arg6[%c0_59, %c0_60] : memref<32x128xf32, #tpu.memory_space<vmem>>, vector<32x128xf32>
      tpu.vector_store %arg6[%c0_59, %c0_60], %201 {strides = array<i32>} : memref<32x128xf32, #tpu.memory_space<vmem>>, vector<32x128xf32>,
      %c2147483647_i32_61 = arith.constant 2147483647 : i32
      %203 = vector.broadcast %c2147483647_i32_61 : i32 to vector<32x128xi32>
      %c0_62 = arith.constant 0 : index
      %c0_63 = arith.constant 0 : index
      %204 = vector.load %arg7[%c0_62, %c0_63] : memref<32x128xi32, #tpu.memory_space<vmem>>, vector<32x128xi32>
      tpu.vector_store %arg7[%c0_62, %c0_63], %203 {strides = array<i32>} : memref<32x128xi32, #tpu.memory_space<vmem>>, vector<32x128xi32>,
    } else {
    }
    %c0 = arith.constant 0 : index
    %c0_1 = arith.constant 0 : index
    %3 = vector.load %arg2[%c0, %c0_1] : memref<32x3xf32, #tpu.memory_space<vmem>>, vector<32x3xf32>
    %c0_2 = arith.constant 0 : index
    %c0_3 = arith.constant 0 : index
    %4 = vector.load %arg3[%c0_2, %c0_3] : memref<3x128xf32, #tpu.memory_space<vmem>>, vector<3x128xf32>
    %c0_4 = arith.constant 0 : index
    %c0_5 = arith.constant 0 : index
    %5 = vector.load %arg4[%c0_4, %c0_5] : memref<1x128xf32, #tpu.memory_space<vmem>>, vector<1x128xf32>
    %cst = arith.constant dense<0.000000e+00> : vector<32x128xf32>
    %6 = tpu.matmul %3, %4, %cst {dimension_numbers = #tpu.dot_dimension_numbers<[1], [0], [0], [1], [0, 0, 1, 1], [], []>} : vector<32x3xf32>, vector<3x128xf32>, vector<32x128xf32> -> vector<32x128xf32>
    %cst_6 = arith.constant 2.000000e+00 : f32
    %7 = vector.broadcast %cst_6 : f32 to vector<32x128xf32>
    %8 = arith.mulf %7, %6 : vector<32x128xf32>
    %9 = vector.broadcast %5 : vector<1x128xf32> to vector<32x128xf32>
    %10 = arith.subf %9, %8 : vector<32x128xf32>
    %c128_i32 = arith.constant 128 : i32
    %11 = arith.muli %arg1, %c128_i32 : i32
    %12 = tpu.iota {dimensions = array<i32: 1>} : vector<1x128xi32>
    %13 = vector.broadcast %11 : i32 to vector<1x128xi32>
    %14 = arith.addi %13, %12 : vector<1x128xi32>
    %c0_7 = arith.constant 0 : index
    %c0_8 = arith.constant 0 : index
    %15 = vector.load %arg6[%c0_7, %c0_8] : memref<32x128xf32, #tpu.memory_space<vmem>>, vector<32x128xf32>
    %16 = tpu.concatenate %10, %15 in 1 : vector<32x128xf32>, vector<32x128xf32> -> vector<32x256xf32>
    %17 = vector.shape_cast %14 : vector<1x128xi32> to vector<1x128xi32>
    %18 = vector.broadcast %17 : vector<1x128xi32> to vector<32x128xi32>
    %c0_9 = arith.constant 0 : index
    %c0_10 = arith.constant 0 : index
    %19 = vector.load %arg7[%c0_9, %c0_10] : memref<32x128xi32, #tpu.memory_space<vmem>>, vector<32x128xi32>
    %20 = tpu.concatenate %18, %19 in 1 : vector<32x128xi32>, vector<32x128xi32> -> vector<32x256xi32>
    %21 = tpu.iota {dimensions = array<i32: 1>} : vector<32x128xi32>
    %cst_11 = arith.constant 3.40282347E+38 : f32
    %22 = vector.broadcast %cst_11 : f32 to vector<32x128xf32>
    %c2147483647_i32 = arith.constant 2147483647 : i32
    %23 = vector.broadcast %c2147483647_i32 : i32 to vector<32x128xi32>
    %cst_12 = arith.constant dense<0x7F800000> : vector<32xf32>
    %24 = vector.multi_reduction <minimumf>, %16, %cst_12 [1] : vector<32x256xf32> to vector<32xf32>
    %25 = vector.shape_cast %24 : vector<32xf32> to vector<32x1xf32>
    %26 = vector.broadcast %25 : vector<32x1xf32> to vector<32x256xf32>
    %27 = arith.cmpf oeq, %16, %26 : vector<32x256xf32>
    %c2147483647_i32_13 = arith.constant 2147483647 : i32
    %28 = vector.broadcast %c2147483647_i32_13 : i32 to vector<32x256xi32>
    %29 = arith.select %27, %20, %28 : vector<32x256xi1>, vector<32x256xi32>
    %cst_14 = arith.constant dense<2147483647> : vector<32xi32>
    %30 = vector.multi_reduction <minsi>, %29, %cst_14 [1] : vector<32x256xi32> to vector<32xi32>
    %31 = vector.shape_cast %30 : vector<32xi32> to vector<32x1xi32>
    %c0_i32_15 = arith.constant 0 : i32
    %32 = vector.broadcast %c0_i32_15 : i32 to vector<32x128xi32>
    %33 = arith.cmpi eq, %21, %32 : vector<32x128xi32>
    %34 = vector.shape_cast %25 : vector<32x1xf32> to vector<32x1xf32>
    %35 = vector.broadcast %34 : vector<32x1xf32> to vector<32x128xf32>
    %36 = arith.select %33, %35, %22 : vector<32x128xi1>, vector<32x128xf32>
    %c0_i32_16 = arith.constant 0 : i32
    %37 = vector.broadcast %c0_i32_16 : i32 to vector<32x128xi32>
    %38 = arith.cmpi eq, %21, %37 : vector<32x128xi32>
    %39 = vector.shape_cast %31 : vector<32x1xi32> to vector<32x1xi32>
    %40 = vector.broadcast %39 : vector<32x1xi32> to vector<32x128xi32>
    %41 = arith.select %38, %40, %23 : vector<32x128xi1>, vector<32x128xi32>
    %42 = vector.broadcast %31 : vector<32x1xi32> to vector<32x256xi32>
    %43 = arith.cmpi eq, %20, %42 : vector<32x256xi32>
    %cst_17 = arith.constant 3.40282347E+38 : f32
    %44 = vector.broadcast %cst_17 : f32 to vector<32x256xf32>
    %45 = arith.select %43, %44, %16 : vector<32x256xi1>, vector<32x256xf32>
    %cst_18 = arith.constant dense<0x7F800000> : vector<32xf32>
    %46 = vector.multi_reduction <minimumf>, %45, %cst_18 [1] : vector<32x256xf32> to vector<32xf32>
    %47 = vector.shape_cast %46 : vector<32xf32> to vector<32x1xf32>
    %48 = vector.broadcast %47 : vector<32x1xf32> to vector<32x256xf32>
    %49 = arith.cmpf oeq, %45, %48 : vector<32x256xf32>
    %c2147483647_i32_19 = arith.constant 2147483647 : i32
    %50 = vector.broadcast %c2147483647_i32_19 : i32 to vector<32x256xi32>
    %51 = arith.select %49, %20, %50 : vector<32x256xi1>, vector<32x256xi32>
    %cst_20 = arith.constant dense<2147483647> : vector<32xi32>
    %52 = vector.multi_reduction <minsi>, %51, %cst_20 [1] : vector<32x256xi32> to vector<32xi32>
    %53 = vector.shape_cast %52 : vector<32xi32> to vector<32x1xi32>
    %c1_i32 = arith.constant 1 : i32
    %54 = vector.broadcast %c1_i32 : i32 to vector<32x128xi32>
    %55 = arith.cmpi eq, %21, %54 : vector<32x128xi32>
    %56 = vector.shape_cast %47 : vector<32x1xf32> to vector<32x1xf32>
    %57 = vector.broadcast %56 : vector<32x1xf32> to vector<32x128xf32>
    %58 = arith.select %55, %57, %36 : vector<32x128xi1>, vector<32x128xf32>
    %c1_i32_21 = arith.constant 1 : i32
    %59 = vector.broadcast %c1_i32_21 : i32 to vector<32x128xi32>
    %60 = arith.cmpi eq, %21, %59 : vector<32x128xi32>
    %61 = vector.shape_cast %53 : vector<32x1xi32> to vector<32x1xi32>
    %62 = vector.broadcast %61 : vector<32x1xi32> to vector<32x128xi32>
    %63 = arith.select %60, %62, %41 : vector<32x128xi1>, vector<32x128xi32>
    %64 = vector.broadcast %53 : vector<32x1xi32> to vector<32x256xi32>
    %65 = arith.cmpi eq, %20, %64 : vector<32x256xi32>
    %cst_22 = arith.constant 3.40282347E+38 : f32
    %66 = vector.broadcast %cst_22 : f32 to vector<32x256xf32>
    %67 = arith.select %65, %66, %45 : vector<32x256xi1>, vector<32x256xf32>
    %cst_23 = arith.constant dense<0x7F800000> : vector<32xf32>
    %68 = vector.multi_reduction <minimumf>, %67, %cst_23 [1] : vector<32x256xf32> to vector<32xf32>
    %69 = vector.shape_cast %68 : vector<32xf32> to vector<32x1xf32>
    %70 = vector.broadcast %69 : vector<32x1xf32> to vector<32x256xf32>
    %71 = arith.cmpf oeq, %67, %70 : vector<32x256xf32>
    %c2147483647_i32_24 = arith.constant 2147483647 : i32
    %72 = vector.broadcast %c2147483647_i32_24 : i32 to vector<32x256xi32>
    %73 = arith.select %71, %20, %72 : vector<32x256xi1>, vector<32x256xi32>
    %cst_25 = arith.constant dense<2147483647> : vector<32xi32>
    %74 = vector.multi_reduction <minsi>, %73, %cst_25 [1] : vector<32x256xi32> to vector<32xi32>
    %75 = vector.shape_cast %74 : vector<32xi32> to vector<32x1xi32>
    %c2_i32 = arith.constant 2 : i32
    %76 = vector.broadcast %c2_i32 : i32 to vector<32x128xi32>
    %77 = arith.cmpi eq, %21, %76 : vector<32x128xi32>
    %78 = vector.shape_cast %69 : vector<32x1xf32> to vector<32x1xf32>
    %79 = vector.broadcast %78 : vector<32x1xf32> to vector<32x128xf32>
    %80 = arith.select %77, %79, %58 : vector<32x128xi1>, vector<32x128xf32>
    %c2_i32_26 = arith.constant 2 : i32
    %81 = vector.broadcast %c2_i32_26 : i32 to vector<32x128xi32>
    %82 = arith.cmpi eq, %21, %81 : vector<32x128xi32>
    %83 = vector.shape_cast %75 : vector<32x1xi32> to vector<32x1xi32>
    %84 = vector.broadcast %83 : vector<32x1xi32> to vector<32x128xi32>
    %85 = arith.select %82, %84, %63 : vector<32x128xi1>, vector<32x128xi32>
    %86 = vector.broadcast %75 : vector<32x1xi32> to vector<32x256xi32>
    %87 = arith.cmpi eq, %20, %86 : vector<32x256xi32>
    %cst_27 = arith.constant 3.40282347E+38 : f32
    %88 = vector.broadcast %cst_27 : f32 to vector<32x256xf32>
    %89 = arith.select %87, %88, %67 : vector<32x256xi1>, vector<32x256xf32>
    %cst_28 = arith.constant dense<0x7F800000> : vector<32xf32>
    %90 = vector.multi_reduction <minimumf>, %89, %cst_28 [1] : vector<32x256xf32> to vector<32xf32>
    %91 = vector.shape_cast %90 : vector<32xf32> to vector<32x1xf32>
    %92 = vector.broadcast %91 : vector<32x1xf32> to vector<32x256xf32>
    %93 = arith.cmpf oeq, %89, %92 : vector<32x256xf32>
    %c2147483647_i32_29 = arith.constant 2147483647 : i32
    %94 = vector.broadcast %c2147483647_i32_29 : i32 to vector<32x256xi32>
    %95 = arith.select %93, %20, %94 : vector<32x256xi1>, vector<32x256xi32>
    %cst_30 = arith.constant dense<2147483647> : vector<32xi32>
    %96 = vector.multi_reduction <minsi>, %95, %cst_30 [1] : vector<32x256xi32> to vector<32xi32>
    %97 = vector.shape_cast %96 : vector<32xi32> to vector<32x1xi32>
    %c3_i32 = arith.constant 3 : i32
    %98 = vector.broadcast %c3_i32 : i32 to vector<32x128xi32>
    %99 = arith.cmpi eq, %21, %98 : vector<32x128xi32>
    %100 = vector.shape_cast %91 : vector<32x1xf32> to vector<32x1xf32>
    %101 = vector.broadcast %100 : vector<32x1xf32> to vector<32x128xf32>
    %102 = arith.select %99, %101, %80 : vector<32x128xi1>, vector<32x128xf32>
    %c3_i32_31 = arith.constant 3 : i32
    %103 = vector.broadcast %c3_i32_31 : i32 to vector<32x128xi32>
    %104 = arith.cmpi eq, %21, %103 : vector<32x128xi32>
    %105 = vector.shape_cast %97 : vector<32x1xi32> to vector<32x1xi32>
    %106 = vector.broadcast %105 : vector<32x1xi32> to vector<32x128xi32>
    %107 = arith.select %104, %106, %85 : vector<32x128xi1>, vector<32x128xi32>
    %108 = vector.broadcast %97 : vector<32x1xi32> to vector<32x256xi32>
    %109 = arith.cmpi eq, %20, %108 : vector<32x256xi32>
    %cst_32 = arith.constant 3.40282347E+38 : f32
    %110 = vector.broadcast %cst_32 : f32 to vector<32x256xf32>
    %111 = arith.select %109, %110, %89 : vector<32x256xi1>, vector<32x256xf32>
    %cst_33 = arith.constant dense<0x7F800000> : vector<32xf32>
    %112 = vector.multi_reduction <minimumf>, %111, %cst_33 [1] : vector<32x256xf32> to vector<32xf32>
    %113 = vector.shape_cast %112 : vector<32xf32> to vector<32x1xf32>
    %114 = vector.broadcast %113 : vector<32x1xf32> to vector<32x256xf32>
    %115 = arith.cmpf oeq, %111, %114 : vector<32x256xf32>
    %c2147483647_i32_34 = arith.constant 2147483647 : i32
    %116 = vector.broadcast %c2147483647_i32_34 : i32 to vector<32x256xi32>
    %117 = arith.select %115, %20, %116 : vector<32x256xi1>, vector<32x256xi32>
    %cst_35 = arith.constant dense<2147483647> : vector<32xi32>
    %118 = vector.multi_reduction <minsi>, %117, %cst_35 [1] : vector<32x256xi32> to vector<32xi32>
    %119 = vector.shape_cast %118 : vector<32xi32> to vector<32x1xi32>
    %c4_i32 = arith.constant 4 : i32
    %120 = vector.broadcast %c4_i32 : i32 to vector<32x128xi32>
    %121 = arith.cmpi eq, %21, %120 : vector<32x128xi32>
    %122 = vector.shape_cast %113 : vector<32x1xf32> to vector<32x1xf32>
    %123 = vector.broadcast %122 : vector<32x1xf32> to vector<32x128xf32>
    %124 = arith.select %121, %123, %102 : vector<32x128xi1>, vector<32x128xf32>
    %c4_i32_36 = arith.constant 4 : i32
    %125 = vector.broadcast %c4_i32_36 : i32 to vector<32x128xi32>
    %126 = arith.cmpi eq, %21, %125 : vector<32x128xi32>
    %127 = vector.shape_cast %119 : vector<32x1xi32> to vector<32x1xi32>
    %128 = vector.broadcast %127 : vector<32x1xi32> to vector<32x128xi32>
    %129 = arith.select %126, %128, %107 : vector<32x128xi1>, vector<32x128xi32>
    %130 = vector.broadcast %119 : vector<32x1xi32> to vector<32x256xi32>
    %131 = arith.cmpi eq, %20, %130 : vector<32x256xi32>
    %cst_37 = arith.constant 3.40282347E+38 : f32
    %132 = vector.broadcast %cst_37 : f32 to vector<32x256xf32>
    %133 = arith.select %131, %132, %111 : vector<32x256xi1>, vector<32x256xf32>
    %cst_38 = arith.constant dense<0x7F800000> : vector<32xf32>
    %134 = vector.multi_reduction <minimumf>, %133, %cst_38 [1] : vector<32x256xf32> to vector<32xf32>
    %135 = vector.shape_cast %134 : vector<32xf32> to vector<32x1xf32>
    %136 = vector.broadcast %135 : vector<32x1xf32> to vector<32x256xf32>
    %137 = arith.cmpf oeq, %133, %136 : vector<32x256xf32>
    %c2147483647_i32_39 = arith.constant 2147483647 : i32
    %138 = vector.broadcast %c2147483647_i32_39 : i32 to vector<32x256xi32>
    %139 = arith.select %137, %20, %138 : vector<32x256xi1>, vector<32x256xi32>
    %cst_40 = arith.constant dense<2147483647> : vector<32xi32>
    %140 = vector.multi_reduction <minsi>, %139, %cst_40 [1] : vector<32x256xi32> to vector<32xi32>
    %141 = vector.shape_cast %140 : vector<32xi32> to vector<32x1xi32>
    %c5_i32 = arith.constant 5 : i32
    %142 = vector.broadcast %c5_i32 : i32 to vector<32x128xi32>
    %143 = arith.cmpi eq, %21, %142 : vector<32x128xi32>
    %144 = vector.shape_cast %135 : vector<32x1xf32> to vector<32x1xf32>
    %145 = vector.broadcast %144 : vector<32x1xf32> to vector<32x128xf32>
    %146 = arith.select %143, %145, %124 : vector<32x128xi1>, vector<32x128xf32>
    %c5_i32_41 = arith.constant 5 : i32
    %147 = vector.broadcast %c5_i32_41 : i32 to vector<32x128xi32>
    %148 = arith.cmpi eq, %21, %147 : vector<32x128xi32>
    %149 = vector.shape_cast %141 : vector<32x1xi32> to vector<32x1xi32>
    %150 = vector.broadcast %149 : vector<32x1xi32> to vector<32x128xi32>
    %151 = arith.select %148, %150, %129 : vector<32x128xi1>, vector<32x128xi32>
    %152 = vector.broadcast %141 : vector<32x1xi32> to vector<32x256xi32>
    %153 = arith.cmpi eq, %20, %152 : vector<32x256xi32>
    %cst_42 = arith.constant 3.40282347E+38 : f32
    %154 = vector.broadcast %cst_42 : f32 to vector<32x256xf32>
    %155 = arith.select %153, %154, %133 : vector<32x256xi1>, vector<32x256xf32>
    %cst_43 = arith.constant dense<0x7F800000> : vector<32xf32>
    %156 = vector.multi_reduction <minimumf>, %155, %cst_43 [1] : vector<32x256xf32> to vector<32xf32>
    %157 = vector.shape_cast %156 : vector<32xf32> to vector<32x1xf32>
    %158 = vector.broadcast %157 : vector<32x1xf32> to vector<32x256xf32>
    %159 = arith.cmpf oeq, %155, %158 : vector<32x256xf32>
    %c2147483647_i32_44 = arith.constant 2147483647 : i32
    %160 = vector.broadcast %c2147483647_i32_44 : i32 to vector<32x256xi32>
    %161 = arith.select %159, %20, %160 : vector<32x256xi1>, vector<32x256xi32>
    %cst_45 = arith.constant dense<2147483647> : vector<32xi32>
    %162 = vector.multi_reduction <minsi>, %161, %cst_45 [1] : vector<32x256xi32> to vector<32xi32>
    %163 = vector.shape_cast %162 : vector<32xi32> to vector<32x1xi32>
    %c6_i32 = arith.constant 6 : i32
    %164 = vector.broadcast %c6_i32 : i32 to vector<32x128xi32>
    %165 = arith.cmpi eq, %21, %164 : vector<32x128xi32>
    %166 = vector.shape_cast %157 : vector<32x1xf32> to vector<32x1xf32>
    %167 = vector.broadcast %166 : vector<32x1xf32> to vector<32x128xf32>
    %168 = arith.select %165, %167, %146 : vector<32x128xi1>, vector<32x128xf32>
    %c6_i32_46 = arith.constant 6 : i32
    %169 = vector.broadcast %c6_i32_46 : i32 to vector<32x128xi32>
    %170 = arith.cmpi eq, %21, %169 : vector<32x128xi32>
    %171 = vector.shape_cast %163 : vector<32x1xi32> to vector<32x1xi32>
    %172 = vector.broadcast %171 : vector<32x1xi32> to vector<32x128xi32>
    %173 = arith.select %170, %172, %151 : vector<32x128xi1>, vector<32x128xi32>
    %174 = vector.broadcast %163 : vector<32x1xi32> to vector<32x256xi32>
    %175 = arith.cmpi eq, %20, %174 : vector<32x256xi32>
    %cst_47 = arith.constant 3.40282347E+38 : f32
    %176 = vector.broadcast %cst_47 : f32 to vector<32x256xf32>
    %177 = arith.select %175, %176, %155 : vector<32x256xi1>, vector<32x256xf32>
    %cst_48 = arith.constant dense<0x7F800000> : vector<32xf32>
    %178 = vector.multi_reduction <minimumf>, %177, %cst_48 [1] : vector<32x256xf32> to vector<32xf32>
    %179 = vector.shape_cast %178 : vector<32xf32> to vector<32x1xf32>
    %180 = vector.broadcast %179 : vector<32x1xf32> to vector<32x256xf32>
    %181 = arith.cmpf oeq, %177, %180 : vector<32x256xf32>
    %c2147483647_i32_49 = arith.constant 2147483647 : i32
    %182 = vector.broadcast %c2147483647_i32_49 : i32 to vector<32x256xi32>
    %183 = arith.select %181, %20, %182 : vector<32x256xi1>, vector<32x256xi32>
    %cst_50 = arith.constant dense<2147483647> : vector<32xi32>
    %184 = vector.multi_reduction <minsi>, %183, %cst_50 [1] : vector<32x256xi32> to vector<32xi32>
    %185 = vector.shape_cast %184 : vector<32xi32> to vector<32x1xi32>
    %c7_i32 = arith.constant 7 : i32
    %186 = vector.broadcast %c7_i32 : i32 to vector<32x128xi32>
    %187 = arith.cmpi eq, %21, %186 : vector<32x128xi32>
    %188 = vector.shape_cast %179 : vector<32x1xf32> to vector<32x1xf32>
    %189 = vector.broadcast %188 : vector<32x1xf32> to vector<32x128xf32>
    %190 = arith.select %187, %189, %168 : vector<32x128xi1>, vector<32x128xf32>
    %c7_i32_51 = arith.constant 7 : i32
    %191 = vector.broadcast %c7_i32_51 : i32 to vector<32x128xi32>
    %192 = arith.cmpi eq, %21, %191 : vector<32x128xi32>
    %193 = vector.shape_cast %185 : vector<32x1xi32> to vector<32x1xi32>
    %194 = vector.broadcast %193 : vector<32x1xi32> to vector<32x128xi32>
    %195 = arith.select %192, %194, %173 : vector<32x128xi1>, vector<32x128xi32>
    %c0_52 = arith.constant 0 : index
    %c0_53 = arith.constant 0 : index
    %196 = vector.load %arg6[%c0_52, %c0_53] : memref<32x128xf32, #tpu.memory_space<vmem>>, vector<32x128xf32>
    tpu.vector_store %arg6[%c0_52, %c0_53], %190 {strides = array<i32>} : memref<32x128xf32, #tpu.memory_space<vmem>>, vector<32x128xf32>,
    %c0_54 = arith.constant 0 : index
    %c0_55 = arith.constant 0 : index
    %197 = vector.load %arg7[%c0_54, %c0_55] : memref<32x128xi32, #tpu.memory_space<vmem>>, vector<32x128xi32>
    tpu.vector_store %arg7[%c0_54, %c0_55], %195 {strides = array<i32>} : memref<32x128xi32, #tpu.memory_space<vmem>>, vector<32x128xi32>,
    %c0_i32_56 = arith.constant 0 : i32
    %198 = arith.cmpi eq, %arg1, %c0_i32_56 : i32
    %199 = arith.extui %198 : i1 to i32
    %c0_i32_57 = arith.constant 0 : i32
    %200 = arith.cmpi ne, %199, %c0_i32_57 : i32
    scf.if %200 {
      %c0_58 = arith.constant 0 : index
      %c0_59 = arith.constant 0 : index
      %201 = vector.load %arg5[%c0_58, %c0_59] : memref<32x128xi32, #tpu.memory_space<vmem>>, vector<32x128xi32>
      tpu.vector_store %arg5[%c0_58, %c0_59], %195 {strides = array<i32>} : memref<32x128xi32, #tpu.memory_space<vmem>>, vector<32x128xi32>,
    } else {
    }
    return
  }
  func.func @transform_0(%arg0: i32, %arg1: i32) -> (i32, i32) {
    %c0_i32 = arith.constant 0 : i32
    %c0_i32_0 = arith.constant 0 : i32
    return %arg0, %c0_i32 : i32, i32
  }
  func.func @transform_1(%arg0: i32, %arg1: i32) -> (i32, i32) {
    %c0_i32 = arith.constant 0 : i32
    %c0_i32_0 = arith.constant 0 : i32
    return %c0_i32, %arg1 : i32, i32
  }
  func.func @transform_2(%arg0: i32, %arg1: i32) -> (i32, i32) {
    %c0_i32 = arith.constant 0 : i32
    %c0_i32_0 = arith.constant 0 : i32
    return %c0_i32, %arg1 : i32, i32
  }
  func.func @transform_3(%arg0: i32, %arg1: i32) -> (i32, i32) {
    %c0_i32 = arith.constant 0 : i32
    %c0_i32_0 = arith.constant 0 : i32
    return %arg0, %c0_i32 : i32, i32
  }
}

</mosaic_0001>

<llo_original>
// kernel: tpu_custom_call.1
$region0: #{tpu_custom_call.1}
  #allocation0 [shape = 'u32[]', space=smem, size = 0x4, offset = 0x4, fixed_abs, tag = 'smem constant byte address 0x4 - core index']
  #allocation1 [shape = 'u32[144,128]{1,0:T(1,128)}', space=vmem, size = 0x12000, scoped, tag = 'internal scratch']
  #allocation2 [shape = 'f32[32,128]{1,0:T(8,128)}', space=vmem, size = 0x4000, scoped, tag = 'scratch operand']
  #allocation3 [shape = 's32[32,128]{1,0:T(8,128)}', space=vmem, size = 0x4000, scoped, tag = 'scratch operand']
  %s0 = inlined_call_operand.vmem [shape: f32[64,3], index: 0, kind: input, shape index: {}]
  %s1 = inlined_call_operand.vmem [shape: f32[3,128], index: 1, kind: input, shape index: {}]
  %s2 = inlined_call_operand.vmem [shape: f32[1,128], index: 2, kind: input, shape index: {}]
  %s3 = inlined_call_operand.hbm [shape: s32[64,128], index: 3, kind: output, shape index: {}]
  %s4 = sld [smem:[#allocation0]]
  $region53: #{tpu_custom_call.1} parent=0
    _
  %s6 = ssub.s32 1, %s4
  %s7 = scalar_select 0, %s6, %s4
  $region1: #{tpu_custom_call.1} parent=0
    #allocation4 [shape = 'u8[32768]{0}', space=vmem, size = 0x8000, scoped, tag = 'output window, operand 0']
    #allocation5 [shape = 's32[2]{0}', space=sflag, size = 0x8, scoped, tag = 'scoped memory for tpu_custom_call.1']
    %8 = vsyncpa [#allocation5], 0
    %s9 = scalar_lea.sflag [#allocation5], 1
    %10 = vsyncpa %s9, 0
    loop: start=0, step=1, limit=4
    $region2: #{tpu_custom_call.1} parent=1 // loop_pre_header
      _
    $region3: #{tpu_custom_call.1} parent=1 // loop_header
      %s12 = sphi 0, %s16
      %p13 = scmp.ge.s32.totalorder %s12, 4
      %s19 = sphi 0, %s31
      %s20 = sphi 0, %s27
      %s21 = sphi 0, %s19
      %s22 = sphi 0, %s20
      %s23 = sphi 0, %s21
      %s24 = sphi 0, %s22
      %s34 = sphi 0, %s36
      %s37 = sphi 0, %s34
      %s38 = sphi 0, %s37
      %s54 = sphi 0, %s38
      %s60 = sphi 0, %s62
      %s63 = sphi 0, %s60
      %s64 = sphi 0, %s63
      %s80 = sphi 0, %s64
      %s86 = sphi 0, %s88
      %s89 = sphi 0, %s86
      %s90 = sphi 0, %s89
      %s106 = sphi 0, %s90
      %s112 = sphi 0, %s114
      %s115 = sphi 0, %s112
      %s116 = sphi 0, %s115
      %s132 = sphi 0, %s116
    $region4: #{tpu_custom_call.1} parent=1 // loop_header_branch
      %15 = sbr.rel (%p13) target = $region8
    $region5: #{tpu_custom_call.1} parent=1 // loop_body
      %s17 = ssub.s32 %s12, 1
      %s18 = ssub.s32 %s12, 2
      %s25 = sadd.s32 1, %s20
      %p26 = scmp.ge.s32.totalorder %s25, 1
      %s27 = scalar_select %p26, 0, %s25
      %s28 = sadd.s32 1, %s19
      %s29 = scalar_select %p26, %s28, %s19
      %p30 = scmp.ge.s32.totalorder %s29, 2
      %s31 = scalar_select %p30, 0, %s29
      %s32 = ssub.s32 %s19, %s31
      %p33 = scmp.eq.s32.totalorder %s32, 0
      %s35 = sadd.s32 %s34, 1
      %s36 = scalar_select %p33, %s34, %s35
      %p39 = pneg %p33
      %p40 = scmp.eq.s32.totalorder %s12, 1
      %p41 = por %p39, %p40
      %p42 = scmp.ne.s32.totalorder %s34, %s37
      %p43 = scmp.eq.s32.totalorder %s12, 0
      %p44 = por %p42, %p43
      %p45 = scmp.ne.s32.totalorder %s34, %s37
      %p46 = scmp.eq.s32.totalorder %s17, 1
      %p47 = por %p45, %p46
      %p48 = scmp.ne.s32.totalorder %s37, %s38
      %p49 = scmp.eq.s32.totalorder %s17, 0
      %p50 = por %p48, %p49
      %p51 = scmp.ne.s32.totalorder %s37, %s38
      %p52 = scmp.eq.s32.totalorder %s18, 1
      %p53 = por %p51, %p52
      %p55 = scmp.ne.s32.totalorder %s38, %s54
      %p56 = scmp.eq.s32.totalorder %s18, 0
      %p57 = por %p55, %p56
      %s58 = ssub.s32 %s20, %s27
      %p59 = scmp.eq.s32.totalorder %s58, 0
      %s61 = sadd.s32 %s60, 1
      %s62 = scalar_select %p59, %s60, %s61
      %p65 = pneg %p59
      %p66 = scmp.eq.s32.totalorder %s12, 1
      %p67 = por %p65, %p66
      %p68 = scmp.ne.s32.totalorder %s60, %s63
      %p69 = scmp.eq.s32.totalorder %s12, 0
      %p70 = por %p68, %p69
      %p71 = scmp.ne.s32.totalorder %s60, %s63
      %p72 = scmp.eq.s32.totalorder %s17, 1
      %p73 = por %p71, %p72
      %p74 = scmp.ne.s32.totalorder %s63, %s64
      %p75 = scmp.eq.s32.totalorder %s17, 0
      %p76 = por %p74, %p75
      %p77 = scmp.ne.s32.totalorder %s63, %s64
      %p78 = scmp.eq.s32.totalorder %s18, 1
      %p79 = por %p77, %p78
      %p81 = scmp.ne.s32.totalorder %s64, %s80
      %p82 = scmp.eq.s32.totalorder %s18, 0
      %p83 = por %p81, %p82
      %s84 = ssub.s32 %s20, %s27
      %p85 = scmp.eq.s32.totalorder %s84, 0
      %s87 = sadd.s32 %s86, 1
      %s88 = scalar_select %p85, %s86, %s87
      %p91 = pneg %p85
      %p92 = scmp.eq.s32.totalorder %s12, 1
      %p93 = por %p91, %p92
      %p94 = scmp.ne.s32.totalorder %s86, %s89
      %p95 = scmp.eq.s32.totalorder %s12, 0
      %p96 = por %p94, %p95
      %p97 = scmp.ne.s32.totalorder %s86, %s89
      %p98 = scmp.eq.s32.totalorder %s17, 1
      %p99 = por %p97, %p98
      %p100 = scmp.ne.s32.totalorder %s89, %s90
      %p101 = scmp.eq.s32.totalorder %s17, 0
      %p102 = por %p100, %p101
      %p103 = scmp.ne.s32.totalorder %s89, %s90
      %p104 = scmp.eq.s32.totalorder %s18, 1
      %p105 = por %p103, %p104
      %p107 = scmp.ne.s32.totalorder %s90, %s106
      %p108 = scmp.eq.s32.totalorder %s18, 0
      %p109 = por %p107, %p108
      %s110 = ssub.s32 %s19, %s31
      %p111 = scmp.eq.s32.totalorder %s110, 0
      %s113 = sadd.s32 %s112, 1
      %s114 = scalar_select %p111, %s112, %s113
      %p117 = pneg %p111
      %p118 = scmp.eq.s32.totalorder %s12, 1
      %p119 = por %p117, %p118
      %p120 = scmp.ne.s32.totalorder %s112, %s115
      %p121 = scmp.eq.s32.totalorder %s12, 0
      %p122 = por %p120, %p121
      %p123 = scmp.ne.s32.totalorder %s112, %s115
      %p124 = scmp.eq.s32.totalorder %s17, 1
      %p125 = por %p123, %p124
      %p126 = scmp.ne.s32.totalorder %s115, %s116
      %p127 = scmp.eq.s32.totalorder %s17, 0
      %p128 = por %p126, %p127
      %p129 = scmp.ne.s32.totalorder %s115, %s116
      %p130 = scmp.eq.s32.totalorder %s18, 1
      %p131 = por %p129, %p130
      %p133 = scmp.ne.s32.totalorder %s116, %s132
      %p134 = scmp.eq.s32.totalorder %s18, 0
      %p135 = por %p133, %p134
      %p136 = scmp.le.s32.totalorder 1, %s12
      %p137 = scmp.lt.s32.totalorder %s12, 3
      %p138 = pnand %p136, %p137
      %p139 = pneg %p138
      // Predicated region
      $region9: #{tpu_custom_call.1} parent=5 // pred_check
        _
      $region10: #{tpu_custom_call.1} parent=5 // pred_check_branch
        %141 = sbr.rel (%p138) target = $region12
      $region11: #{tpu_custom_call.1} parent=5 // pred_region
        %s142 = ssub.s32 %s12, 1
        // Predicated region
        $region13: #{tpu_custom_call.1} parent=11 // pred_check
          %p143 = pneg %p76
        $region14: #{tpu_custom_call.1} parent=11 // pred_check_branch
          %145 = sbr.rel (%p143) target = $region16
        $region15: #{tpu_custom_call.1} parent=11 // pred_region
          %p146 = scmp.lt.s32.totalorder %s22, 0
          %s147 = scalar_select %p146, %s22, 0
          %s148 = smul.addr %s147, 4
          %s149 = scalar_lea.vmem %s1, %s148
        $region16: #{tpu_custom_call.1} parent=11 // pred_fallthru
          _
        // Predicated region
        $region17: #{tpu_custom_call.1} parent=11 // pred_check
          %p150 = pneg %p102
        $region18: #{tpu_custom_call.1} parent=11 // pred_check_branch
          %152 = sbr.rel (%p150) target = $region20
        $region19: #{tpu_custom_call.1} parent=11 // pred_region
          %p153 = scmp.lt.s32.totalorder %s22, 0
          %s154 = scalar_select %p153, %s22, 0
          %s155 = scalar_lea.vmem %s2, %s154
        $region20: #{tpu_custom_call.1} parent=11 // pred_fallthru
          _
      $region12: #{tpu_custom_call.1} parent=5 // pred_fallthru
        _
      %p156 = scmp.lt.s32.totalorder %s12, 2
      // Predicated region
      $region21: #{tpu_custom_call.1} parent=5 // pred_check
        %p157 = pneg %p156
      $region22: #{tpu_custom_call.1} parent=5 // pred_check_branch
        %159 = sbr.rel (%p157) target = $region24
      $region23: #{tpu_custom_call.1} parent=5 // pred_region
        // Predicated region
        $region25: #{tpu_custom_call.1} parent=23 // pred_check
          %p160 = pneg %p44
        $region26: #{tpu_custom_call.1} parent=23 // pred_check_branch
          %162 = sbr.rel (%p160) target = $region28
        $region27: #{tpu_custom_call.1} parent=23 // pred_region
          %s163 = smul.u32 4, %s19
          %p164 = scmp.lt.s32.totalorder %s163, 7
          %s165 = scalar_select %p164, %s163, 7
          %s166 = smul.addr %s165, 8
          %s167 = scalar_lea.vmem %s0, %s166
          %s168 = smul.u32 4, %s19
        $region28: #{tpu_custom_call.1} parent=23 // pred_fallthru
          _
      $region24: #{tpu_custom_call.1} parent=5 // pred_fallthru
        _
      %p169 = scmp.le.s32.totalorder 1, %s12
      %p170 = scmp.lt.s32.totalorder %s12, 3
      %p171 = pnand %p169, %p170
      %p172 = pneg %p171
      // Predicated region
      $region29: #{tpu_custom_call.1} parent=5 // pred_check
        _
      $region30: #{tpu_custom_call.1} parent=5 // pred_check_branch
        %174 = sbr.rel (%p171) target = $region32
      $region31: #{tpu_custom_call.1} parent=5 // pred_region
        %s175 = ssub.s32 %s12, 1
        %s176 = smul.u32 4, %s21
        %p177 = scmp.lt.s32.totalorder %s176, 7
        %s178 = scalar_select %p177, %s176, 7
        %s179 = smul.addr %s178, 8
        %s180 = scalar_lea.vmem %s0, %s179
        %p181 = pneg %p50
        %p182 = pneg %p47
        %p183 = scmp.lt.s32.totalorder %s22, 0
        %s184 = scalar_select %p183, %s22, 0
        %s185 = smul.addr %s184, 4
        %s186 = scalar_lea.vmem %s1, %s185
        %p187 = pneg %p76
        %p188 = pneg %p73
        %p189 = scmp.lt.s32.totalorder %s22, 0
        %s190 = scalar_select %p189, %s22, 0
        %s191 = scalar_lea.vmem %s2, %s190
        %p192 = pneg %p102
        %p193 = pneg %p99
        %p194 = pneg %p128
        %p195 = pneg %p125
        %s196 = sand.u32 %s115, 1
        %s197 = scalar_lea.sflag [#allocation5], %s196
        %s198 = sand.u32 %s115, 1
        %s199 = smul.addr %s198, 32
        %s200 = scalar_lea.vmem [#allocation4], %s199
        %s201 = smul.u32 4, %s21
        %p202 = scmp.lt.s32.totalorder %s201, 7
        %s203 = scalar_select %p202, %s201, 7
        %s204 = smul.addr %s203, 8
        %s205 = scalar_lea.vmem %s0, %s204
        %s206 = smul.u32 4, %s21
        %p207 = scmp.lt.s32.totalorder %s22, 0
        %s208 = scalar_select %p207, %s22, 0
        %s209 = smul.addr %s208, 4
        %s210 = scalar_lea.vmem %s1, %s209
        %p211 = scmp.lt.s32.totalorder %s22, 0
        %s212 = scalar_select %p211, %s22, 0
        %s213 = scalar_lea.vmem %s2, %s212
        %s214 = smul.u32 4, %s21
        %p215 = scmp.eq.s32.totalorder %s22, 0
        // Predicated region
        $region33: #{tpu_custom_call.1} parent=31 // pred_check
          %p216 = pneg %p215
        $region34: #{tpu_custom_call.1} parent=31 // pred_check_branch
          %218 = sbr.rel (%p216) target = $region36
        $region35: #{tpu_custom_call.1} parent=31 // pred_region
          %219 = vst [vmem:[#allocation2] sm:$0xff] 3.4028235e+38
          %220 = vst [vmem:[#allocation2 + $0x8] sm:$0xff] 3.4028235e+38
          %221 = vst [vmem:[#allocation2 + $0x10] sm:$0xff] 3.4028235e+38
          %222 = vst [vmem:[#allocation2 + $0x18] sm:$0xff] 3.4028235e+38
          %223 = vst [vmem:[#allocation3] sm:$0xff] 2147483647
          %224 = vst [vmem:[#allocation3 + $0x8] sm:$0xff] 2147483647
          %225 = vst [vmem:[#allocation3 + $0x10] sm:$0xff] 2147483647
          %226 = vst [vmem:[#allocation3 + $0x18] sm:$0xff] 2147483647
        $region36: #{tpu_custom_call.1} parent=31 // pred_fallthru
          _
        %v227 = vld [vmem:[%s205] sm:$0xff]
        %v228 = vld [vmem:[%s205 + $0x8] sm:$0xff]
        %v229 = vld [vmem:[%s205 + $0x10] sm:$0xff]
        %v230 = vld [vmem:[%s205 + $0x18] sm:$0xff]
        %v231 = vld [vmem:[%s210] sm:$0x7]
        %v232 = vld [vmem:[%s213] sm:$0x1]
        %vm233 = vcmask 23552
        %v235 = vsel %vm233, %v227, 0
        %v238 = vsel %vm233, %v228, 0
        %v241 = vsel %vm233, %v229, 0
        %v244 = vsel %vm233, %v230, 0
        %vm246 = vcmask 1042432
        %v248 = vsel %vm246, %v231, 0
        %250 = vmatprep.subr.mxu0 0.0
        %251 = vmatpush1.msra.mxu0 0.0
        %252 = vmatprep.subr.mxu0 0.0
        %253 = vmatpush1.msra.mxu0 0.0
        %254 = vmatprep.subr.mxu0 0.0
        %255 = vmatpush1.msra.mxu0 0.0
        %256 = vmatprep.subr.mxu0 0.0
        %257 = vmatpush1.msra.mxu0 0.0
        %258 = vmatprep.subr.mxu0 0.0
        %259 = vmatpush1.msra.mxu0 0.0
        %260 = vmatprep.subr.mxu0 0.0
        %261 = vmatpush1.msra.mxu0 0.0
        %262 = vmatprep.subr.mxu0 0.0
        %263 = vmatpush1.msra.mxu0 0.0
        %264 = vmatprep.subr.mxu0 0.0
        %265 = vmatpush1.msra.mxu0 0.0
        %266 = vmatprep.subr.mxu0 0.0
        %267 = vmatpush1.msra.mxu0 0.0
        %268 = vmatprep.subr.mxu0 0.0
        %269 = vmatpush1.msra.mxu0 0.0
        %270 = vmatprep.subr.mxu0 0.0
        %271 = vmatpush1.msra.mxu0 0.0
        %272 = vmatprep.subr.mxu0 0.0
        %273 = vmatpush1.msra.mxu0 0.0
        %274 = vmatprep.subr.mxu0 0.0
        %275 = vmatpush1.msra.mxu0 0.0
        %276 = vmatprep.subr.mxu0 0.0
        %277 = vmatpush1.msra.mxu0 0.0
        %278 = vmatprep.subr.mxu0 0.0
        %279 = vmatpush1.msra.mxu0 0.0
        %280 = vmatprep.subr.mxu0 0.0
        %281 = vmatpush1.msra.mxu0 %v248
        %282 = vmatprep.subr.mxu0 0.0
        %283 = vmatpush2.msra.mxu0 0.0
        %284 = vmatprep.subr.mxu0 0.0
        %285 = vmatpush2.msra.mxu0 0.0
        %286 = vmatprep.subr.mxu0 0.0
        %287 = vmatpush2.msra.mxu0 0.0
        %288 = vmatprep.subr.mxu0 0.0
        %289 = vmatpush2.msra.mxu0 0.0
        %290 = vmatprep.subr.mxu0 0.0
        %291 = vmatpush2.msra.mxu0 0.0
        %292 = vmatprep.subr.mxu0 0.0
        %293 = vmatpush2.msra.mxu0 0.0
        %294 = vmatprep.subr.mxu0 0.0
        %295 = vmatpush2.msra.mxu0 0.0
        %296 = vmatprep.subr.mxu0 0.0
        %297 = vmatpush2.msra.mxu0 0.0
        %298 = vmatprep.subr.mxu0 0.0
        %299 = vmatpush2.msra.mxu0 0.0
        %300 = vmatprep.subr.mxu0 0.0
        %301 = vmatpush2.msra.mxu0 0.0
        %302 = vmatprep.subr.mxu0 0.0
        %303 = vmatpush2.msra.mxu0 0.0
        %304 = vmatprep.subr.mxu0 0.0
        %305 = vmatpush2.msra.mxu0 0.0
        %306 = vmatprep.subr.mxu0 0.0
        %307 = vmatpush2.msra.mxu0 0.0
        %308 = vmatprep.subr.mxu0 0.0
        %309 = vmatpush2.msra.mxu0 0.0
        %310 = vmatprep.subr.mxu0 0.0
        %311 = vmatpush2.msra.mxu0 0.0
        %312 = vmatprep.subr.mxu0 0.0
        %313 = vmatpush2.msra.mxu0 0.0
        %314 = vmatprep.mubr.f32.mxu0 0.0
        %315 = vmatmul.mubr.f32.gmra.mxu0 %v235
        %v316 = vpop.f32.mrf.mxu0
        %v317 = vadd.f32 0.0, %v316
        %v318 = vpop.f32.mrf.mxu0
        %319 = vmatprep.mubr.f32.mxu0 0.0
        %320 = vmatmul.mubr.f32.gmra.mxu0 %v238
        %v321 = vpop.f32.mrf.mxu0
        %v322 = vadd.f32 0.0, %v321
        %v323 = vpop.f32.mrf.mxu0
        %324 = vmatprep.mubr.f32.mxu0 0.0
        %325 = vmatmul.mubr.f32.gmra.mxu0 %v241
        %v326 = vpop.f32.mrf.mxu0
        %v327 = vadd.f32 0.0, %v326
        %v328 = vpop.f32.mrf.mxu0
        %329 = vmatprep.mubr.f32.mxu0 0.0
        %330 = vmatmul.mubr.f32.gmra.mxu0 %v244
        %v331 = vpop.f32.mrf.mxu0
        %v332 = vadd.f32 0.0, %v331
        %v333 = vpop.f32.mrf.mxu0
        %334 = vdwg.mxu0
        %v335 = vmul.f32 %v317, 2.0
        %v336 = vmul.f32 %v322, 2.0
        %v337 = vmul.f32 %v327, 2.0
        %v338 = vmul.f32 %v332, 2.0
        %v340 = vlaneseq
        %v341 = vshrl.u32 %v340, 7
        %v342 = vsub.s32 0, %v341
        %v343 = vrot.slane %v232, %v342
        %v345 = vsub.f32 %v343, %v335
        %v346 = vsub.f32 %v343, %v336
        %v347 = vsub.f32 %v343, %v337
        %v348 = vsub.f32 %v343, %v338
        %s349 = smul.u32 %s22, 128
        %v350 = vlaneseq
        %v351 = vand.u32 %v350, 127
        %v352 = vstv %s349
        %v353 = vadd.s32 %v352, %v351
        %v354 = vld [vmem:[#allocation2] sm:$0xff]
        %v355 = vld [vmem:[#allocation2 + $0x8] sm:$0xff]
        %v356 = vld [vmem:[#allocation2 + $0x10] sm:$0xff]
        %v357 = vld [vmem:[#allocation2 + $0x18] sm:$0xff]
        %v358 = vld [vmem:[#allocation3] sm:$0xff]
        %v359 = vld [vmem:[#allocation3 + $0x8] sm:$0xff]
        %v360 = vld [vmem:[#allocation3 + $0x10] sm:$0xff]
        %v361 = vld [vmem:[#allocation3 + $0x18] sm:$0xff]
        %v362 = vmin.f32 %v345, %v354
        %363 = vmin.xlane.f32.xlu0 %v362
        %v364 = vpop.xlane.xlu0 %363
        %v365 = vmin.f32 %v346, %v355
        %366 = vmin.xlane.f32.xlu0 %v365
        %v367 = vpop.xlane.xlu0 %366
        %v368 = vmin.f32 %v347, %v356
        %369 = vmin.xlane.f32.xlu0 %v368
        %v370 = vpop.xlane.xlu0 %369
        %v371 = vmin.f32 %v348, %v357
        %372 = vmin.xlane.f32.xlu0 %v371
        %v373 = vpop.xlane.xlu0 %372
        %vm374 = vcmp.eq.f32.partialorder %v345, %v364
        %vm375 = vcmp.eq.f32.partialorder %v354, %v364
        %vm376 = vcmp.eq.f32.partialorder %v346, %v367
        %vm377 = vcmp.eq.f32.partialorder %v355, %v367
        %vm378 = vcmp.eq.f32.partialorder %v347, %v370
        %vm379 = vcmp.eq.f32.partialorder %v356, %v370
        %vm380 = vcmp.eq.f32.partialorder %v348, %v373
        %vm381 = vcmp.eq.f32.partialorder %v357, %v373
        %v382 = vsel %vm374, %v353, 2147483647
        %v383 = vsel %vm375, %v358, 2147483647
        %v384 = vsel %vm376, %v353, 2147483647
        %v385 = vsel %vm377, %v359, 2147483647
        %v386 = vsel %vm378, %v353, 2147483647
        %v387 = vsel %vm379, %v360, 2147483647
        %v388 = vsel %vm380, %v353, 2147483647
        %v389 = vsel %vm381, %v361, 2147483647
        %vm390 = vcmp.lt.s32.totalorder %v382, %v383
        %v391 = vsel %vm390, %v382, %v383
        %v392 = vand.u32 %v391, 65535
        %v393 = vshra.s32 %v391, 16
        %v394 = vcvt.s32.f32 %v392
        %v395 = vcvt.s32.f32 %v393
        %396 = vmin.xlane.f32.xlu0 %v395
        %v397 = vpop.xlane.xlu0 %396
        %vm398 = vcmp.eq.f32.partialorder %v395, %v397
        %v399 = vsel %vm398, %v394, inf
        %400 = vmin.xlane.f32.xlu0 %v399
        %v401 = vpop.xlane.xlu0 %400
        %v402 = vcvt.f32.s32 %v401
        %v403 = vcvt.f32.s32 %v397
        %v404 = vshll.u32 %v403, 16
        %v405 = vadd.s32 %v404, %v402
        %vm406 = vcmp.lt.s32.totalorder %v384, %v385
        %v407 = vsel %vm406, %v384, %v385
        %v408 = vand.u32 %v407, 65535
        %v409 = vshra.s32 %v407, 16
        %v410 = vcvt.s32.f32 %v408
        %v411 = vcvt.s32.f32 %v409
        %412 = vmin.xlane.f32.xlu0 %v411
        %v413 = vpop.xlane.xlu0 %412
        %vm414 = vcmp.eq.f32.partialorder %v411, %v413
        %v415 = vsel %vm414, %v410, inf
        %416 = vmin.xlane.f32.xlu0 %v415
        %v417 = vpop.xlane.xlu0 %416
        %v418 = vcvt.f32.s32 %v417
        %v419 = vcvt.f32.s32 %v413
        %v420 = vshll.u32 %v419, 16
        %v421 = vadd.s32 %v420, %v418
        %vm422 = vcmp.lt.s32.totalorder %v386, %v387
        %v423 = vsel %vm422, %v386, %v387
        %v424 = vand.u32 %v423, 65535
        %v425 = vshra.s32 %v423, 16
        %v426 = vcvt.s32.f32 %v424
        %v427 = vcvt.s32.f32 %v425
        %428 = vmin.xlane.f32.xlu0 %v427
        %v429 = vpop.xlane.xlu0 %428
        %vm430 = vcmp.eq.f32.partialorder %v427, %v429
        %v431 = vsel %vm430, %v426, inf
        %432 = vmin.xlane.f32.xlu0 %v431
        %v433 = vpop.xlane.xlu0 %432
        %v434 = vcvt.f32.s32 %v433
        %v435 = vcvt.f32.s32 %v429
        %v436 = vshll.u32 %v435, 16
        %v437 = vadd.s32 %v436, %v434
        %vm438 = vcmp.lt.s32.totalorder %v388, %v389
        %v439 = vsel %vm438, %v388, %v389
        %v440 = vand.u32 %v439, 65535
        %v441 = vshra.s32 %v439, 16
        %v442 = vcvt.s32.f32 %v440
        %v443 = vcvt.s32.f32 %v441
        %444 = vmin.xlane.f32.xlu0 %v443
        %v445 = vpop.xlane.xlu0 %444
        %vm446 = vcmp.eq.f32.partialorder %v443, %v445
        %v447 = vsel %vm446, %v442, inf
        %448 = vmin.xlane.f32.xlu0 %v447
        %v449 = vpop.xlane.xlu0 %448
        %v450 = vcvt.f32.s32 %v449
        %v451 = vcvt.f32.s32 %v445
        %v452 = vshll.u32 %v451, 16
        %v453 = vadd.s32 %v452, %v450
        %vm454 = vcmp.eq.s32.totalorder %v351, 0
        %v455 = vsel %vm454, %v364, 3.4028235e+38
        %v456 = vsel %vm454, %v367, 3.4028235e+38
        %v457 = vsel %vm454, %v370, 3.4028235e+38
        %v458 = vsel %vm454, %v373, 3.4028235e+38
        %v459 = vsel %vm454, %v405, 2147483647
        %v460 = vsel %vm454, %v421, 2147483647
        %v461 = vsel %vm454, %v437, 2147483647
        %v462 = vsel %vm454, %v453, 2147483647
        %vm463 = vcmp.eq.s32.totalorder %v353, %v405
        %vm464 = vcmp.eq.s32.totalorder %v358, %v405
        %vm465 = vcmp.eq.s32.totalorder %v353, %v421
        %vm466 = vcmp.eq.s32.totalorder %v359, %v421
        %vm467 = vcmp.eq.s32.totalorder %v353, %v437
        %vm468 = vcmp.eq.s32.totalorder %v360, %v437
        %vm469 = vcmp.eq.s32.totalorder %v353, %v453
        %vm470 = vcmp.eq.s32.totalorder %v361, %v453
        %v471 = vsel %vm463, 3.4028235e+38, %v345
        %v472 = vsel %vm464, 3.4028235e+38, %v354
        %v473 = vsel %vm465, 3.4028235e+38, %v346
        %v474 = vsel %vm466, 3.4028235e+38, %v355
        %v475 = vsel %vm467, 3.4028235e+38, %v347
        %v476 = vsel %vm468, 3.4028235e+38, %v356
        %v477 = vsel %vm469, 3.4028235e+38, %v348
        %v478 = vsel %vm470, 3.4028235e+38, %v357
        %v479 = vmin.f32 %v471, %v472
        %480 = vmin.xlane.f32.xlu0 %v479
        %v481 = vpop.xlane.xlu0 %480
        %v482 = vmin.f32 %v473, %v474
        %483 = vmin.xlane.f32.xlu0 %v482
        %v484 = vpop.xlane.xlu0 %483
        %v485 = vmin.f32 %v475, %v476
        %486 = vmin.xlane.f32.xlu0 %v485
        %v487 = vpop.xlane.xlu0 %486
        %v488 = vmin.f32 %v477, %v478
        %489 = vmin.xlane.f32.xlu0 %v488
        %v490 = vpop.xlane.xlu0 %489
        %vm491 = vcmp.eq.f32.partialorder %v471, %v481
        %vm492 = vcmp.eq.f32.partialorder %v472, %v481
        %vm493 = vcmp.eq.f32.partialorder %v473, %v484
        %vm494 = vcmp.eq.f32.partialorder %v474, %v484
        %vm495 = vcmp.eq.f32.partialorder %v475, %v487
        %vm496 = vcmp.eq.f32.partialorder %v476, %v487
        %vm497 = vcmp.eq.f32.partialorder %v477, %v490
        %vm498 = vcmp.eq.f32.partialorder %v478, %v490
        %v499 = vsel %vm491, %v353, 2147483647
        %v500 = vsel %vm492, %v358, 2147483647
        %v501 = vsel %vm493, %v353, 2147483647
        %v502 = vsel %vm494, %v359, 2147483647
        %v503 = vsel %vm495, %v353, 2147483647
        %v504 = vsel %vm496, %v360, 2147483647
        %v505 = vsel %vm497, %v353, 2147483647
        %v506 = vsel %vm498, %v361, 2147483647
        %vm507 = vcmp.lt.s32.totalorder %v499, %v500
        %v508 = vsel %vm507, %v499, %v500
        %v509 = vand.u32 %v508, 65535
        %v510 = vshra.s32 %v508, 16
        %v511 = vcvt.s32.f32 %v509
        %v512 = vcvt.s32.f32 %v510
        %513 = vmin.xlane.f32.xlu0 %v512
        %v514 = vpop.xlane.xlu0 %513
        %vm515 = vcmp.eq.f32.partialorder %v512, %v514
        %v516 = vsel %vm515, %v511, inf
        %517 = vmin.xlane.f32.xlu0 %v516
        %v518 = vpop.xlane.xlu0 %517
        %v519 = vcvt.f32.s32 %v518
        %v520 = vcvt.f32.s32 %v514
        %v521 = vshll.u32 %v520, 16
        %v522 = vadd.s32 %v521, %v519
        %vm523 = vcmp.lt.s32.totalorder %v501, %v502
        %v524 = vsel %vm523, %v501, %v502
        %v525 = vand.u32 %v524, 65535
        %v526 = vshra.s32 %v524, 16
        %v527 = vcvt.s32.f32 %v525
        %v528 = vcvt.s32.f32 %v526
        %529 = vmin.xlane.f32.xlu0 %v528
        %v530 = vpop.xlane.xlu0 %529
        %vm531 = vcmp.eq.f32.partialorder %v528, %v530
        %v532 = vsel %vm531, %v527, inf
        %533 = vmin.xlane.f32.xlu0 %v532
        %v534 = vpop.xlane.xlu0 %533
        %v535 = vcvt.f32.s32 %v534
        %v536 = vcvt.f32.s32 %v530
        %v537 = vshll.u32 %v536, 16
        %v538 = vadd.s32 %v537, %v535
        %vm539 = vcmp.lt.s32.totalorder %v503, %v504
        %v540 = vsel %vm539, %v503, %v504
        %v541 = vand.u32 %v540, 65535
        %v542 = vshra.s32 %v540, 16
        %v543 = vcvt.s32.f32 %v541
        %v544 = vcvt.s32.f32 %v542
        %545 = vmin.xlane.f32.xlu0 %v544
        %v546 = vpop.xlane.xlu0 %545
        %vm547 = vcmp.eq.f32.partialorder %v544, %v546
        %v548 = vsel %vm547, %v543, inf
        %549 = vmin.xlane.f32.xlu0 %v548
        %v550 = vpop.xlane.xlu0 %549
        %v551 = vcvt.f32.s32 %v550
        %v552 = vcvt.f32.s32 %v546
        %v553 = vshll.u32 %v552, 16
        %v554 = vadd.s32 %v553, %v551
        %vm555 = vcmp.lt.s32.totalorder %v505, %v506
        %v556 = vsel %vm555, %v505, %v506
        %v557 = vand.u32 %v556, 65535
        %v558 = vshra.s32 %v556, 16
        %v559 = vcvt.s32.f32 %v557
        %v560 = vcvt.s32.f32 %v558
        %561 = vmin.xlane.f32.xlu0 %v560
        %v562 = vpop.xlane.xlu0 %561
        %vm563 = vcmp.eq.f32.partialorder %v560, %v562
        %v564 = vsel %vm563, %v559, inf
        %565 = vmin.xlane.f32.xlu0 %v564
        %v566 = vpop.xlane.xlu0 %565
        %v567 = vcvt.f32.s32 %v566
        %v568 = vcvt.f32.s32 %v562
        %v569 = vshll.u32 %v568, 16
        %v570 = vadd.s32 %v569, %v567
        %vm571 = vcmp.eq.s32.totalorder %v351, 1
        %v572 = vsel %vm571, %v481, %v455
        %v573 = vsel %vm571, %v484, %v456
        %v574 = vsel %vm571, %v487, %v457
        %v575 = vsel %vm571, %v490, %v458
        %v576 = vsel %vm571, %v522, %v459
        %v577 = vsel %vm571, %v538, %v460
        %v578 = vsel %vm571, %v554, %v461
        %v579 = vsel %vm571, %v570, %v462
        %vm580 = vcmp.eq.s32.totalorder %v353, %v522
        %vm581 = vcmp.eq.s32.totalorder %v358, %v522
        %vm582 = vcmp.eq.s32.totalorder %v353, %v538
        %vm583 = vcmp.eq.s32.totalorder %v359, %v538
        %vm584 = vcmp.eq.s32.totalorder %v353, %v554
        %vm585 = vcmp.eq.s32.totalorder %v360, %v554
        %vm586 = vcmp.eq.s32.totalorder %v353, %v570
        %vm587 = vcmp.eq.s32.totalorder %v361, %v570
        %v588 = vsel %vm580, 3.4028235e+38, %v471
        %v589 = vsel %vm581, 3.4028235e+38, %v472
        %v590 = vsel %vm582, 3.4028235e+38, %v473
        %v591 = vsel %vm583, 3.4028235e+38, %v474
        %v592 = vsel %vm584, 3.4028235e+38, %v475
        %v593 = vsel %vm585, 3.4028235e+38, %v476
        %v594 = vsel %vm586, 3.4028235e+38, %v477
        %v595 = vsel %vm587, 3.4028235e+38, %v478
        %v596 = vmin.f32 %v588, %v589
        %597 = vmin.xlane.f32.xlu0 %v596
        %v598 = vpop.xlane.xlu0 %597
        %v599 = vmin.f32 %v590, %v591
        %600 = vmin.xlane.f32.xlu0 %v599
        %v601 = vpop.xlane.xlu0 %600
        %v602 = vmin.f32 %v592, %v593
        %603 = vmin.xlane.f32.xlu0 %v602
        %v604 = vpop.xlane.xlu0 %603
        %v605 = vmin.f32 %v594, %v595
        %606 = vmin.xlane.f32.xlu0 %v605
        %v607 = vpop.xlane.xlu0 %606
        %vm608 = vcmp.eq.f32.partialorder %v588, %v598
        %vm609 = vcmp.eq.f32.partialorder %v589, %v598
        %vm610 = vcmp.eq.f32.partialorder %v590, %v601
        %vm611 = vcmp.eq.f32.partialorder %v591, %v601
        %vm612 = vcmp.eq.f32.partialorder %v592, %v604
        %vm613 = vcmp.eq.f32.partialorder %v593, %v604
        %vm614 = vcmp.eq.f32.partialorder %v594, %v607
        %vm615 = vcmp.eq.f32.partialorder %v595, %v607
        %v616 = vsel %vm608, %v353, 2147483647
        %v617 = vsel %vm609, %v358, 2147483647
        %v618 = vsel %vm610, %v353, 2147483647
        %v619 = vsel %vm611, %v359, 2147483647
        %v620 = vsel %vm612, %v353, 2147483647
        %v621 = vsel %vm613, %v360, 2147483647
        %v622 = vsel %vm614, %v353, 2147483647
        %v623 = vsel %vm615, %v361, 2147483647
        %vm624 = vcmp.lt.s32.totalorder %v616, %v617
        %v625 = vsel %vm624, %v616, %v617
        %v626 = vand.u32 %v625, 65535
        %v627 = vshra.s32 %v625, 16
        %v628 = vcvt.s32.f32 %v626
        %v629 = vcvt.s32.f32 %v627
        %630 = vmin.xlane.f32.xlu0 %v629
        %v631 = vpop.xlane.xlu0 %630
        %vm632 = vcmp.eq.f32.partialorder %v629, %v631
        %v633 = vsel %vm632, %v628, inf
        %634 = vmin.xlane.f32.xlu0 %v633
        %v635 = vpop.xlane.xlu0 %634
        %v636 = vcvt.f32.s32 %v635
        %v637 = vcvt.f32.s32 %v631
        %v638 = vshll.u32 %v637, 16
        %v639 = vadd.s32 %v638, %v636
        %vm640 = vcmp.lt.s32.totalorder %v618, %v619
        %v641 = vsel %vm640, %v618, %v619
        %v642 = vand.u32 %v641, 65535
        %v643 = vshra.s32 %v641, 16
        %v644 = vcvt.s32.f32 %v642
        %v645 = vcvt.s32.f32 %v643
        %646 = vmin.xlane.f32.xlu0 %v645
        %v647 = vpop.xlane.xlu0 %646
        %vm648 = vcmp.eq.f32.partialorder %v645, %v647
        %v649 = vsel %vm648, %v644, inf
        %650 = vmin.xlane.f32.xlu0 %v649
        %v651 = vpop.xlane.xlu0 %650
        %v652 = vcvt.f32.s32 %v651
        %v653 = vcvt.f32.s32 %v647
        %v654 = vshll.u32 %v653, 16
        %v655 = vadd.s32 %v654, %v652
        %vm656 = vcmp.lt.s32.totalorder %v620, %v621
        %v657 = vsel %vm656, %v620, %v621
        %v658 = vand.u32 %v657, 65535
        %v659 = vshra.s32 %v657, 16
        %v660 = vcvt.s32.f32 %v658
        %v661 = vcvt.s32.f32 %v659
        %662 = vmin.xlane.f32.xlu0 %v661
        %v663 = vpop.xlane.xlu0 %662
        %vm664 = vcmp.eq.f32.partialorder %v661, %v663
        %v665 = vsel %vm664, %v660, inf
        %666 = vmin.xlane.f32.xlu0 %v665
        %v667 = vpop.xlane.xlu0 %666
        %v668 = vcvt.f32.s32 %v667
        %v669 = vcvt.f32.s32 %v663
        %v670 = vshll.u32 %v669, 16
        %v671 = vadd.s32 %v670, %v668
        %vm672 = vcmp.lt.s32.totalorder %v622, %v623
        %v673 = vsel %vm672, %v622, %v623
        %v674 = vand.u32 %v673, 65535
        %v675 = vshra.s32 %v673, 16
        %v676 = vcvt.s32.f32 %v674
        %v677 = vcvt.s32.f32 %v675
        %678 = vmin.xlane.f32.xlu0 %v677
        %v679 = vpop.xlane.xlu0 %678
        %vm680 = vcmp.eq.f32.partialorder %v677, %v679
        %v681 = vsel %vm680, %v676, inf
        %682 = vmin.xlane.f32.xlu0 %v681
        %v683 = vpop.xlane.xlu0 %682
        %v684 = vcvt.f32.s32 %v683
        %v685 = vcvt.f32.s32 %v679
        %v686 = vshll.u32 %v685, 16
        %v687 = vadd.s32 %v686, %v684
        %vm688 = vcmp.eq.s32.totalorder %v351, 2
        %v689 = vsel %vm688, %v598, %v572
        %v690 = vsel %vm688, %v601, %v573
        %v691 = vsel %vm688, %v604, %v574
        %v692 = vsel %vm688, %v607, %v575
        %v693 = vsel %vm688, %v639, %v576
        %v694 = vsel %vm688, %v655, %v577
        %v695 = vsel %vm688, %v671, %v578
        %v696 = vsel %vm688, %v687, %v579
        %vm697 = vcmp.eq.s32.totalorder %v353, %v639
        %vm698 = vcmp.eq.s32.totalorder %v358, %v639
        %vm699 = vcmp.eq.s32.totalorder %v353, %v655
        %vm700 = vcmp.eq.s32.totalorder %v359, %v655
        %vm701 = vcmp.eq.s32.totalorder %v353, %v671
        %vm702 = vcmp.eq.s32.totalorder %v360, %v671
        %vm703 = vcmp.eq.s32.totalorder %v353, %v687
        %vm704 = vcmp.eq.s32.totalorder %v361, %v687
        %v705 = vsel %vm697, 3.4028235e+38, %v588
        %v706 = vsel %vm698, 3.4028235e+38, %v589
        %v707 = vsel %vm699, 3.4028235e+38, %v590
        %v708 = vsel %vm700, 3.4028235e+38, %v591
        %v709 = vsel %vm701, 3.4028235e+38, %v592
        %v710 = vsel %vm702, 3.4028235e+38, %v593
        %v711 = vsel %vm703, 3.4028235e+38, %v594
        %v712 = vsel %vm704, 3.4028235e+38, %v595
        %v713 = vmin.f32 %v705, %v706
        %714 = vmin.xlane.f32.xlu0 %v713
        %v715 = vpop.xlane.xlu0 %714
        %v716 = vmin.f32 %v707, %v708
        %717 = vmin.xlane.f32.xlu0 %v716
        %v718 = vpop.xlane.xlu0 %717
        %v719 = vmin.f32 %v709, %v710
        %720 = vmin.xlane.f32.xlu0 %v719
        %v721 = vpop.xlane.xlu0 %720
        %v722 = vmin.f32 %v711, %v712
        %723 = vmin.xlane.f32.xlu0 %v722
        %v724 = vpop.xlane.xlu0 %723
        %vm725 = vcmp.eq.f32.partialorder %v705, %v715
        %vm726 = vcmp.eq.f32.partialorder %v706, %v715
        %vm727 = vcmp.eq.f32.partialorder %v707, %v718
        %vm728 = vcmp.eq.f32.partialorder %v708, %v718
        %vm729 = vcmp.eq.f32.partialorder %v709, %v721
        %vm730 = vcmp.eq.f32.partialorder %v710, %v721
        %vm731 = vcmp.eq.f32.partialorder %v711, %v724
        %vm732 = vcmp.eq.f32.partialorder %v712, %v724
        %v733 = vsel %vm725, %v353, 2147483647
        %v734 = vsel %vm726, %v358, 2147483647
        %v735 = vsel %vm727, %v353, 2147483647
        %v736 = vsel %vm728, %v359, 2147483647
        %v737 = vsel %vm729, %v353, 2147483647
        %v738 = vsel %vm730, %v360, 2147483647
        %v739 = vsel %vm731, %v353, 2147483647
        %v740 = vsel %vm732, %v361, 2147483647
        %vm741 = vcmp.lt.s32.totalorder %v733, %v734
        %v742 = vsel %vm741, %v733, %v734
        %v743 = vand.u32 %v742, 65535
        %v744 = vshra.s32 %v742, 16
        %v745 = vcvt.s32.f32 %v743
        %v746 = vcvt.s32.f32 %v744
        %747 = vmin.xlane.f32.xlu0 %v746
        %v748 = vpop.xlane.xlu0 %747
        %vm749 = vcmp.eq.f32.partialorder %v746, %v748
        %v750 = vsel %vm749, %v745, inf
        %751 = vmin.xlane.f32.xlu0 %v750
        %v752 = vpop.xlane.xlu0 %751
        %v753 = vcvt.f32.s32 %v752
        %v754 = vcvt.f32.s32 %v748
        %v755 = vshll.u32 %v754, 16
        %v756 = vadd.s32 %v755, %v753
        %vm757 = vcmp.lt.s32.totalorder %v735, %v736
        %v758 = vsel %vm757, %v735, %v736
        %v759 = vand.u32 %v758, 65535
        %v760 = vshra.s32 %v758, 16
        %v761 = vcvt.s32.f32 %v759
        %v762 = vcvt.s32.f32 %v760
        %763 = vmin.xlane.f32.xlu0 %v762
        %v764 = vpop.xlane.xlu0 %763
        %vm765 = vcmp.eq.f32.partialorder %v762, %v764
        %v766 = vsel %vm765, %v761, inf
        %767 = vmin.xlane.f32.xlu0 %v766
        %v768 = vpop.xlane.xlu0 %767
        %v769 = vcvt.f32.s32 %v768
        %v770 = vcvt.f32.s32 %v764
        %v771 = vshll.u32 %v770, 16
        %v772 = vadd.s32 %v771, %v769
        %vm773 = vcmp.lt.s32.totalorder %v737, %v738
        %v774 = vsel %vm773, %v737, %v738
        %v775 = vand.u32 %v774, 65535
        %v776 = vshra.s32 %v774, 16
        %v777 = vcvt.s32.f32 %v775
        %v778 = vcvt.s32.f32 %v776
        %779 = vmin.xlane.f32.xlu0 %v778
        %v780 = vpop.xlane.xlu0 %779
        %vm781 = vcmp.eq.f32.partialorder %v778, %v780
        %v782 = vsel %vm781, %v777, inf
        %783 = vmin.xlane.f32.xlu0 %v782
        %v784 = vpop.xlane.xlu0 %783
        %v785 = vcvt.f32.s32 %v784
        %v786 = vcvt.f32.s32 %v780
        %v787 = vshll.u32 %v786, 16
        %v788 = vadd.s32 %v787, %v785
        %vm789 = vcmp.lt.s32.totalorder %v739, %v740
        %v790 = vsel %vm789, %v739, %v740
        %v791 = vand.u32 %v790, 65535
        %v792 = vshra.s32 %v790, 16
        %v793 = vcvt.s32.f32 %v791
        %v794 = vcvt.s32.f32 %v792
        %795 = vmin.xlane.f32.xlu0 %v794
        %v796 = vpop.xlane.xlu0 %795
        %vm797 = vcmp.eq.f32.partialorder %v794, %v796
        %v798 = vsel %vm797, %v793, inf
        %799 = vmin.xlane.f32.xlu0 %v798
        %v800 = vpop.xlane.xlu0 %799
        %v801 = vcvt.f32.s32 %v800
        %v802 = vcvt.f32.s32 %v796
        %v803 = vshll.u32 %v802, 16
        %v804 = vadd.s32 %v803, %v801
        %vm805 = vcmp.eq.s32.totalorder %v351, 3
        %v806 = vsel %vm805, %v715, %v689
        %v807 = vsel %vm805, %v718, %v690
        %v808 = vsel %vm805, %v721, %v691
        %v809 = vsel %vm805, %v724, %v692
        %v810 = vsel %vm805, %v756, %v693
        %v811 = vsel %vm805, %v772, %v694
        %v812 = vsel %vm805, %v788, %v695
        %v813 = vsel %vm805, %v804, %v696
        %vm814 = vcmp.eq.s32.totalorder %v353, %v756
        %vm815 = vcmp.eq.s32.totalorder %v358, %v756
        %vm816 = vcmp.eq.s32.totalorder %v353, %v772
        %vm817 = vcmp.eq.s32.totalorder %v359, %v772
        %vm818 = vcmp.eq.s32.totalorder %v353, %v788
        %vm819 = vcmp.eq.s32.totalorder %v360, %v788
        %vm820 = vcmp.eq.s32.totalorder %v353, %v804
        %vm821 = vcmp.eq.s32.totalorder %v361, %v804
        %v822 = vsel %vm814, 3.4028235e+38, %v705
        %v823 = vsel %vm815, 3.4028235e+38, %v706
        %v824 = vsel %vm816, 3.4028235e+38, %v707
        %v825 = vsel %vm817, 3.4028235e+38, %v708
        %v826 = vsel %vm818, 3.4028235e+38, %v709
        %v827 = vsel %vm819, 3.4028235e+38, %v710
        %v828 = vsel %vm820, 3.4028235e+38, %v711
        %v829 = vsel %vm821, 3.4028235e+38, %v712
        %v830 = vmin.f32 %v822, %v823
        %831 = vmin.xlane.f32.xlu0 %v830
        %v832 = vpop.xlane.xlu0 %831
        %v833 = vmin.f32 %v824, %v825
        %834 = vmin.xlane.f32.xlu0 %v833
        %v835 = vpop.xlane.xlu0 %834
        %v836 = vmin.f32 %v826, %v827
        %837 = vmin.xlane.f32.xlu0 %v836
        %v838 = vpop.xlane.xlu0 %837
        %v839 = vmin.f32 %v828, %v829
        %840 = vmin.xlane.f32.xlu0 %v839
        %v841 = vpop.xlane.xlu0 %840
        %vm842 = vcmp.eq.f32.partialorder %v822, %v832
        %vm843 = vcmp.eq.f32.partialorder %v823, %v832
        %vm844 = vcmp.eq.f32.partialorder %v824, %v835
        %vm845 = vcmp.eq.f32.partialorder %v825, %v835
        %vm846 = vcmp.eq.f32.partialorder %v826, %v838
        %vm847 = vcmp.eq.f32.partialorder %v827, %v838
        %vm848 = vcmp.eq.f32.partialorder %v828, %v841
        %vm849 = vcmp.eq.f32.partialorder %v829, %v841
        %v850 = vsel %vm842, %v353, 2147483647
        %v851 = vsel %vm843, %v358, 2147483647
        %v852 = vsel %vm844, %v353, 2147483647
        %v853 = vsel %vm845, %v359, 2147483647
        %v854 = vsel %vm846, %v353, 2147483647
        %v855 = vsel %vm847, %v360, 2147483647
        %v856 = vsel %vm848, %v353, 2147483647
        %v857 = vsel %vm849, %v361, 2147483647
        %vm858 = vcmp.lt.s32.totalorder %v850, %v851
        %v859 = vsel %vm858, %v850, %v851
        %v860 = vand.u32 %v859, 65535
        %v861 = vshra.s32 %v859, 16
        %v862 = vcvt.s32.f32 %v860
        %v863 = vcvt.s32.f32 %v861
        %864 = vmin.xlane.f32.xlu0 %v863
        %v865 = vpop.xlane.xlu0 %864
        %vm866 = vcmp.eq.f32.partialorder %v863, %v865
        %v867 = vsel %vm866, %v862, inf
        %868 = vmin.xlane.f32.xlu0 %v867
        %v869 = vpop.xlane.xlu0 %868
        %v870 = vcvt.f32.s32 %v869
        %v871 = vcvt.f32.s32 %v865
        %v872 = vshll.u32 %v871, 16
        %v873 = vadd.s32 %v872, %v870
        %vm874 = vcmp.lt.s32.totalorder %v852, %v853
        %v875 = vsel %vm874, %v852, %v853
        %v876 = vand.u32 %v875, 65535
        %v877 = vshra.s32 %v875, 16
        %v878 = vcvt.s32.f32 %v876
        %v879 = vcvt.s32.f32 %v877
        %880 = vmin.xlane.f32.xlu0 %v879
        %v881 = vpop.xlane.xlu0 %880
        %vm882 = vcmp.eq.f32.partialorder %v879, %v881
        %v883 = vsel %vm882, %v878, inf
        %884 = vmin.xlane.f32.xlu0 %v883
        %v885 = vpop.xlane.xlu0 %884
        %v886 = vcvt.f32.s32 %v885
        %v887 = vcvt.f32.s32 %v881
        %v888 = vshll.u32 %v887, 16
        %v889 = vadd.s32 %v888, %v886
        %vm890 = vcmp.lt.s32.totalorder %v854, %v855
        %v891 = vsel %vm890, %v854, %v855
        %v892 = vand.u32 %v891, 65535
        %v893 = vshra.s32 %v891, 16
        %v894 = vcvt.s32.f32 %v892
        %v895 = vcvt.s32.f32 %v893
        %896 = vmin.xlane.f32.xlu0 %v895
        %v897 = vpop.xlane.xlu0 %896
        %vm898 = vcmp.eq.f32.partialorder %v895, %v897
        %v899 = vsel %vm898, %v894, inf
        %900 = vmin.xlane.f32.xlu0 %v899
        %v901 = vpop.xlane.xlu0 %900
        %v902 = vcvt.f32.s32 %v901
        %v903 = vcvt.f32.s32 %v897
        %v904 = vshll.u32 %v903, 16
        %v905 = vadd.s32 %v904, %v902
        %vm906 = vcmp.lt.s32.totalorder %v856, %v857
        %v907 = vsel %vm906, %v856, %v857
        %v908 = vand.u32 %v907, 65535
        %v909 = vshra.s32 %v907, 16
        %v910 = vcvt.s32.f32 %v908
        %v911 = vcvt.s32.f32 %v909
        %912 = vmin.xlane.f32.xlu0 %v911
        %v913 = vpop.xlane.xlu0 %912
        %vm914 = vcmp.eq.f32.partialorder %v911, %v913
        %v915 = vsel %vm914, %v910, inf
        %916 = vmin.xlane.f32.xlu0 %v915
        %v917 = vpop.xlane.xlu0 %916
        %v918 = vcvt.f32.s32 %v917
        %v919 = vcvt.f32.s32 %v913
        %v920 = vshll.u32 %v919, 16
        %v921 = vadd.s32 %v920, %v918
        %vm922 = vcmp.eq.s32.totalorder %v351, 4
        %v923 = vsel %vm922, %v832, %v806
        %v924 = vsel %vm922, %v835, %v807
        %v925 = vsel %vm922, %v838, %v808
        %v926 = vsel %vm922, %v841, %v809
        %v927 = vsel %vm922, %v873, %v810
        %v928 = vsel %vm922, %v889, %v811
        %v929 = vsel %vm922, %v905, %v812
        %v930 = vsel %vm922, %v921, %v813
        %vm931 = vcmp.eq.s32.totalorder %v353, %v873
        %vm932 = vcmp.eq.s32.totalorder %v358, %v873
        %vm933 = vcmp.eq.s32.totalorder %v353, %v889
        %vm934 = vcmp.eq.s32.totalorder %v359, %v889
        %vm935 = vcmp.eq.s32.totalorder %v353, %v905
        %vm936 = vcmp.eq.s32.totalorder %v360, %v905
        %vm937 = vcmp.eq.s32.totalorder %v353, %v921
        %vm938 = vcmp.eq.s32.totalorder %v361, %v921
        %v939 = vsel %vm931, 3.4028235e+38, %v822
        %v940 = vsel %vm932, 3.4028235e+38, %v823
        %v941 = vsel %vm933, 3.4028235e+38, %v824
        %v942 = vsel %vm934, 3.4028235e+38, %v825
        %v943 = vsel %vm935, 3.4028235e+38, %v826
        %v944 = vsel %vm936, 3.4028235e+38, %v827
        %v945 = vsel %vm937, 3.4028235e+38, %v828
        %v946 = vsel %vm938, 3.4028235e+38, %v829
        %v947 = vmin.f32 %v939, %v940
        %948 = vmin.xlane.f32.xlu0 %v947
        %v949 = vpop.xlane.xlu0 %948
        %v950 = vmin.f32 %v941, %v942
        %951 = vmin.xlane.f32.xlu0 %v950
        %v952 = vpop.xlane.xlu0 %951
        %v953 = vmin.f32 %v943, %v944
        %954 = vmin.xlane.f32.xlu0 %v953
        %v955 = vpop.xlane.xlu0 %954
        %v956 = vmin.f32 %v945, %v946
        %957 = vmin.xlane.f32.xlu0 %v956
        %v958 = vpop.xlane.xlu0 %957
        %vm959 = vcmp.eq.f32.partialorder %v939, %v949
        %vm960 = vcmp.eq.f32.partialorder %v940, %v949
        %vm961 = vcmp.eq.f32.partialorder %v941, %v952
        %vm962 = vcmp.eq.f32.partialorder %v942, %v952
        %vm963 = vcmp.eq.f32.partialorder %v943, %v955
        %vm964 = vcmp.eq.f32.partialorder %v944, %v955
        %vm965 = vcmp.eq.f32.partialorder %v945, %v958
        %vm966 = vcmp.eq.f32.partialorder %v946, %v958
        %v967 = vsel %vm959, %v353, 2147483647
        %v968 = vsel %vm960, %v358, 2147483647
        %v969 = vsel %vm961, %v353, 2147483647
        %v970 = vsel %vm962, %v359, 2147483647
        %v971 = vsel %vm963, %v353, 2147483647
        %v972 = vsel %vm964, %v360, 2147483647
        %v973 = vsel %vm965, %v353, 2147483647
        %v974 = vsel %vm966, %v361, 2147483647
        %vm975 = vcmp.lt.s32.totalorder %v967, %v968
        %v976 = vsel %vm975, %v967, %v968
        %v977 = vand.u32 %v976, 65535
        %v978 = vshra.s32 %v976, 16
        %v979 = vcvt.s32.f32 %v977
        %v980 = vcvt.s32.f32 %v978
        %981 = vmin.xlane.f32.xlu0 %v980
        %v982 = vpop.xlane.xlu0 %981
        %vm983 = vcmp.eq.f32.partialorder %v980, %v982
        %v984 = vsel %vm983, %v979, inf
        %985 = vmin.xlane.f32.xlu0 %v984
        %v986 = vpop.xlane.xlu0 %985
        %v987 = vcvt.f32.s32 %v986
        %v988 = vcvt.f32.s32 %v982
        %v989 = vshll.u32 %v988, 16
        %v990 = vadd.s32 %v989, %v987
        %vm991 = vcmp.lt.s32.totalorder %v969, %v970
        %v992 = vsel %vm991, %v969, %v970
        %v993 = vand.u32 %v992, 65535
        %v994 = vshra.s32 %v992, 16
        %v995 = vcvt.s32.f32 %v993
        %v996 = vcvt.s32.f32 %v994
        %997 = vmin.xlane.f32.xlu0 %v996
        %v998 = vpop.xlane.xlu0 %997
        %vm999 = vcmp.eq.f32.partialorder %v996, %v998
        %v1000 = vsel %vm999, %v995, inf
        %1001 = vmin.xlane.f32.xlu0 %v1000
        %v1002 = vpop.xlane.xlu0 %1001
        %v1003 = vcvt.f32.s32 %v1002
        %v1004 = vcvt.f32.s32 %v998
        %v1005 = vshll.u32 %v1004, 16
        %v1006 = vadd.s32 %v1005, %v1003
        %vm1007 = vcmp.lt.s32.totalorder %v971, %v972
        %v1008 = vsel %vm1007, %v971, %v972
        %v1009 = vand.u32 %v1008, 65535
        %v1010 = vshra.s32 %v1008, 16
        %v1011 = vcvt.s32.f32 %v1009
        %v1012 = vcvt.s32.f32 %v1010
        %1013 = vmin.xlane.f32.xlu0 %v1012
        %v1014 = vpop.xlane.xlu0 %1013
        %vm1015 = vcmp.eq.f32.partialorder %v1012, %v1014
        %v1016 = vsel %vm1015, %v1011, inf
        %1017 = vmin.xlane.f32.xlu0 %v1016
        %v1018 = vpop.xlane.xlu0 %1017
        %v1019 = vcvt.f32.s32 %v1018
        %v1020 = vcvt.f32.s32 %v1014
        %v1021 = vshll.u32 %v1020, 16
        %v1022 = vadd.s32 %v1021, %v1019
        %vm1023 = vcmp.lt.s32.totalorder %v973, %v974
        %v1024 = vsel %vm1023, %v973, %v974
        %v1025 = vand.u32 %v1024, 65535
        %v1026 = vshra.s32 %v1024, 16
        %v1027 = vcvt.s32.f32 %v1025
        %v1028 = vcvt.s32.f32 %v1026
        %1029 = vmin.xlane.f32.xlu0 %v1028
        %v1030 = vpop.xlane.xlu0 %1029
        %vm1031 = vcmp.eq.f32.partialorder %v1028, %v1030
        %v1032 = vsel %vm1031, %v1027, inf
        %1033 = vmin.xlane.f32.xlu0 %v1032
        %v1034 = vpop.xlane.xlu0 %1033
        %v1035 = vcvt.f32.s32 %v1034
        %v1036 = vcvt.f32.s32 %v1030
        %v1037 = vshll.u32 %v1036, 16
        %v1038 = vadd.s32 %v1037, %v1035
        %vm1039 = vcmp.eq.s32.totalorder %v351, 5
        %v1040 = vsel %vm1039, %v949, %v923
        %v1041 = vsel %vm1039, %v952, %v924
        %v1042 = vsel %vm1039, %v955, %v925
        %v1043 = vsel %vm1039, %v958, %v926
        %v1044 = vsel %vm1039, %v990, %v927
        %v1045 = vsel %vm1039, %v1006, %v928
        %v1046 = vsel %vm1039, %v1022, %v929
        %v1047 = vsel %vm1039, %v1038, %v930
        %vm1048 = vcmp.eq.s32.totalorder %v353, %v990
        %vm1049 = vcmp.eq.s32.totalorder %v358, %v990
        %vm1050 = vcmp.eq.s32.totalorder %v353, %v1006
        %vm1051 = vcmp.eq.s32.totalorder %v359, %v1006
        %vm1052 = vcmp.eq.s32.totalorder %v353, %v1022
        %vm1053 = vcmp.eq.s32.totalorder %v360, %v1022
        %vm1054 = vcmp.eq.s32.totalorder %v353, %v1038
        %vm1055 = vcmp.eq.s32.totalorder %v361, %v1038
        %v1056 = vsel %vm1048, 3.4028235e+38, %v939
        %v1057 = vsel %vm1049, 3.4028235e+38, %v940
        %v1058 = vsel %vm1050, 3.4028235e+38, %v941
        %v1059 = vsel %vm1051, 3.4028235e+38, %v942
        %v1060 = vsel %vm1052, 3.4028235e+38, %v943
        %v1061 = vsel %vm1053, 3.4028235e+38, %v944
        %v1062 = vsel %vm1054, 3.4028235e+38, %v945
        %v1063 = vsel %vm1055, 3.4028235e+38, %v946
        %v1064 = vmin.f32 %v1056, %v1057
        %1065 = vmin.xlane.f32.xlu0 %v1064
        %v1066 = vpop.xlane.xlu0 %1065
        %v1067 = vmin.f32 %v1058, %v1059
        %1068 = vmin.xlane.f32.xlu0 %v1067
        %v1069 = vpop.xlane.xlu0 %1068
        %v1070 = vmin.f32 %v1060, %v1061
        %1071 = vmin.xlane.f32.xlu0 %v1070
        %v1072 = vpop.xlane.xlu0 %1071
        %v1073 = vmin.f32 %v1062, %v1063
        %1074 = vmin.xlane.f32.xlu0 %v1073
        %v1075 = vpop.xlane.xlu0 %1074
        %vm1076 = vcmp.eq.f32.partialorder %v1056, %v1066
        %vm1077 = vcmp.eq.f32.partialorder %v1057, %v1066
        %vm1078 = vcmp.eq.f32.partialorder %v1058, %v1069
        %vm1079 = vcmp.eq.f32.partialorder %v1059, %v1069
        %vm1080 = vcmp.eq.f32.partialorder %v1060, %v1072
        %vm1081 = vcmp.eq.f32.partialorder %v1061, %v1072
        %vm1082 = vcmp.eq.f32.partialorder %v1062, %v1075
        %vm1083 = vcmp.eq.f32.partialorder %v1063, %v1075
        %v1084 = vsel %vm1076, %v353, 2147483647
        %v1085 = vsel %vm1077, %v358, 2147483647
        %v1086 = vsel %vm1078, %v353, 2147483647
        %v1087 = vsel %vm1079, %v359, 2147483647
        %v1088 = vsel %vm1080, %v353, 2147483647
        %v1089 = vsel %vm1081, %v360, 2147483647
        %v1090 = vsel %vm1082, %v353, 2147483647
        %v1091 = vsel %vm1083, %v361, 2147483647
        %vm1092 = vcmp.lt.s32.totalorder %v1084, %v1085
        %v1093 = vsel %vm1092, %v1084, %v1085
        %v1094 = vand.u32 %v1093, 65535
        %v1095 = vshra.s32 %v1093, 16
        %v1096 = vcvt.s32.f32 %v1094
        %v1097 = vcvt.s32.f32 %v1095
        %1098 = vmin.xlane.f32.xlu0 %v1097
        %v1099 = vpop.xlane.xlu0 %1098
        %vm1100 = vcmp.eq.f32.partialorder %v1097, %v1099
        %v1101 = vsel %vm1100, %v1096, inf
        %1102 = vmin.xlane.f32.xlu0 %v1101
        %v1103 = vpop.xlane.xlu0 %1102
        %v1104 = vcvt.f32.s32 %v1103
        %v1105 = vcvt.f32.s32 %v1099
        %v1106 = vshll.u32 %v1105, 16
        %v1107 = vadd.s32 %v1106, %v1104
        %vm1108 = vcmp.lt.s32.totalorder %v1086, %v1087
        %v1109 = vsel %vm1108, %v1086, %v1087
        %v1110 = vand.u32 %v1109, 65535
        %v1111 = vshra.s32 %v1109, 16
        %v1112 = vcvt.s32.f32 %v1110
        %v1113 = vcvt.s32.f32 %v1111
        %1114 = vmin.xlane.f32.xlu0 %v1113
        %v1115 = vpop.xlane.xlu0 %1114
        %vm1116 = vcmp.eq.f32.partialorder %v1113, %v1115
        %v1117 = vsel %vm1116, %v1112, inf
        %1118 = vmin.xlane.f32.xlu0 %v1117
        %v1119 = vpop.xlane.xlu0 %1118
        %v1120 = vcvt.f32.s32 %v1119
        %v1121 = vcvt.f32.s32 %v1115
        %v1122 = vshll.u32 %v1121, 16
        %v1123 = vadd.s32 %v1122, %v1120
        %vm1124 = vcmp.lt.s32.totalorder %v1088, %v1089
        %v1125 = vsel %vm1124, %v1088, %v1089
        %v1126 = vand.u32 %v1125, 65535
        %v1127 = vshra.s32 %v1125, 16
        %v1128 = vcvt.s32.f32 %v1126
        %v1129 = vcvt.s32.f32 %v1127
        %1130 = vmin.xlane.f32.xlu0 %v1129
        %v1131 = vpop.xlane.xlu0 %1130
        %vm1132 = vcmp.eq.f32.partialorder %v1129, %v1131
        %v1133 = vsel %vm1132, %v1128, inf
        %1134 = vmin.xlane.f32.xlu0 %v1133
        %v1135 = vpop.xlane.xlu0 %1134
        %v1136 = vcvt.f32.s32 %v1135
        %v1137 = vcvt.f32.s32 %v1131
        %v1138 = vshll.u32 %v1137, 16
        %v1139 = vadd.s32 %v1138, %v1136
        %vm1140 = vcmp.lt.s32.totalorder %v1090, %v1091
        %v1141 = vsel %vm1140, %v1090, %v1091
        %v1142 = vand.u32 %v1141, 65535
        %v1143 = vshra.s32 %v1141, 16
        %v1144 = vcvt.s32.f32 %v1142
        %v1145 = vcvt.s32.f32 %v1143
        %1146 = vmin.xlane.f32.xlu0 %v1145
        %v1147 = vpop.xlane.xlu0 %1146
        %vm1148 = vcmp.eq.f32.partialorder %v1145, %v1147
        %v1149 = vsel %vm1148, %v1144, inf
        %1150 = vmin.xlane.f32.xlu0 %v1149
        %v1151 = vpop.xlane.xlu0 %1150
        %v1152 = vcvt.f32.s32 %v1151
        %v1153 = vcvt.f32.s32 %v1147
        %v1154 = vshll.u32 %v1153, 16
        %v1155 = vadd.s32 %v1154, %v1152
        %vm1156 = vcmp.eq.s32.totalorder %v351, 6
        %v1157 = vsel %vm1156, %v1066, %v1040
        %v1158 = vsel %vm1156, %v1069, %v1041
        %v1159 = vsel %vm1156, %v1072, %v1042
        %v1160 = vsel %vm1156, %v1075, %v1043
        %v1161 = vsel %vm1156, %v1107, %v1044
        %v1162 = vsel %vm1156, %v1123, %v1045
        %v1163 = vsel %vm1156, %v1139, %v1046
        %v1164 = vsel %vm1156, %v1155, %v1047
        %vm1165 = vcmp.eq.s32.totalorder %v353, %v1107
        %vm1166 = vcmp.eq.s32.totalorder %v358, %v1107
        %vm1167 = vcmp.eq.s32.totalorder %v353, %v1123
        %vm1168 = vcmp.eq.s32.totalorder %v359, %v1123
        %vm1169 = vcmp.eq.s32.totalorder %v353, %v1139
        %vm1170 = vcmp.eq.s32.totalorder %v360, %v1139
        %vm1171 = vcmp.eq.s32.totalorder %v353, %v1155
        %vm1172 = vcmp.eq.s32.totalorder %v361, %v1155
        %v1173 = vsel %vm1165, 3.4028235e+38, %v1056
        %v1174 = vsel %vm1166, 3.4028235e+38, %v1057
        %v1175 = vsel %vm1167, 3.4028235e+38, %v1058
        %v1176 = vsel %vm1168, 3.4028235e+38, %v1059
        %v1177 = vsel %vm1169, 3.4028235e+38, %v1060
        %v1178 = vsel %vm1170, 3.4028235e+38, %v1061
        %v1179 = vsel %vm1171, 3.4028235e+38, %v1062
        %v1180 = vsel %vm1172, 3.4028235e+38, %v1063
        %v1181 = vmin.f32 %v1173, %v1174
        %1182 = vmin.xlane.f32.xlu0 %v1181
        %v1183 = vpop.xlane.xlu0 %1182
        %v1184 = vmin.f32 %v1175, %v1176
        %1185 = vmin.xlane.f32.xlu0 %v1184
        %v1186 = vpop.xlane.xlu0 %1185
        %v1187 = vmin.f32 %v1177, %v1178
        %1188 = vmin.xlane.f32.xlu0 %v1187
        %v1189 = vpop.xlane.xlu0 %1188
        %v1190 = vmin.f32 %v1179, %v1180
        %1191 = vmin.xlane.f32.xlu0 %v1190
        %v1192 = vpop.xlane.xlu0 %1191
        %vm1193 = vcmp.eq.f32.partialorder %v1173, %v1183
        %vm1194 = vcmp.eq.f32.partialorder %v1174, %v1183
        %vm1195 = vcmp.eq.f32.partialorder %v1175, %v1186
        %vm1196 = vcmp.eq.f32.partialorder %v1176, %v1186
        %vm1197 = vcmp.eq.f32.partialorder %v1177, %v1189
        %vm1198 = vcmp.eq.f32.partialorder %v1178, %v1189
        %vm1199 = vcmp.eq.f32.partialorder %v1179, %v1192
        %vm1200 = vcmp.eq.f32.partialorder %v1180, %v1192
        %v1201 = vsel %vm1193, %v353, 2147483647
        %v1202 = vsel %vm1194, %v358, 2147483647
        %v1203 = vsel %vm1195, %v353, 2147483647
        %v1204 = vsel %vm1196, %v359, 2147483647
        %v1205 = vsel %vm1197, %v353, 2147483647
        %v1206 = vsel %vm1198, %v360, 2147483647
        %v1207 = vsel %vm1199, %v353, 2147483647
        %v1208 = vsel %vm1200, %v361, 2147483647
        %vm1209 = vcmp.lt.s32.totalorder %v1201, %v1202
        %v1210 = vsel %vm1209, %v1201, %v1202
        %v1211 = vand.u32 %v1210, 65535
        %v1212 = vshra.s32 %v1210, 16
        %v1213 = vcvt.s32.f32 %v1211
        %v1214 = vcvt.s32.f32 %v1212
        %1215 = vmin.xlane.f32.xlu0 %v1214
        %v1216 = vpop.xlane.xlu0 %1215
        %vm1217 = vcmp.eq.f32.partialorder %v1214, %v1216
        %v1218 = vsel %vm1217, %v1213, inf
        %1219 = vmin.xlane.f32.xlu0 %v1218
        %v1220 = vpop.xlane.xlu0 %1219
        %v1221 = vcvt.f32.s32 %v1220
        %v1222 = vcvt.f32.s32 %v1216
        %v1223 = vshll.u32 %v1222, 16
        %v1224 = vadd.s32 %v1223, %v1221
        %vm1225 = vcmp.lt.s32.totalorder %v1203, %v1204
        %v1226 = vsel %vm1225, %v1203, %v1204
        %v1227 = vand.u32 %v1226, 65535
        %v1228 = vshra.s32 %v1226, 16
        %v1229 = vcvt.s32.f32 %v1227
        %v1230 = vcvt.s32.f32 %v1228
        %1231 = vmin.xlane.f32.xlu0 %v1230
        %v1232 = vpop.xlane.xlu0 %1231
        %vm1233 = vcmp.eq.f32.partialorder %v1230, %v1232
        %v1234 = vsel %vm1233, %v1229, inf
        %1235 = vmin.xlane.f32.xlu0 %v1234
        %v1236 = vpop.xlane.xlu0 %1235
        %v1237 = vcvt.f32.s32 %v1236
        %v1238 = vcvt.f32.s32 %v1232
        %v1239 = vshll.u32 %v1238, 16
        %v1240 = vadd.s32 %v1239, %v1237
        %vm1241 = vcmp.lt.s32.totalorder %v1205, %v1206
        %v1242 = vsel %vm1241, %v1205, %v1206
        %v1243 = vand.u32 %v1242, 65535
        %v1244 = vshra.s32 %v1242, 16
        %v1245 = vcvt.s32.f32 %v1243
        %v1246 = vcvt.s32.f32 %v1244
        %1247 = vmin.xlane.f32.xlu0 %v1246
        %v1248 = vpop.xlane.xlu0 %1247
        %vm1249 = vcmp.eq.f32.partialorder %v1246, %v1248
        %v1250 = vsel %vm1249, %v1245, inf
        %1251 = vmin.xlane.f32.xlu0 %v1250
        %v1252 = vpop.xlane.xlu0 %1251
        %v1253 = vcvt.f32.s32 %v1252
        %v1254 = vcvt.f32.s32 %v1248
        %v1255 = vshll.u32 %v1254, 16
        %v1256 = vadd.s32 %v1255, %v1253
        %vm1257 = vcmp.lt.s32.totalorder %v1207, %v1208
        %v1258 = vsel %vm1257, %v1207, %v1208
        %v1259 = vand.u32 %v1258, 65535
        %v1260 = vshra.s32 %v1258, 16
        %v1261 = vcvt.s32.f32 %v1259
        %v1262 = vcvt.s32.f32 %v1260
        %1263 = vmin.xlane.f32.xlu0 %v1262
        %v1264 = vpop.xlane.xlu0 %1263
        %vm1265 = vcmp.eq.f32.partialorder %v1262, %v1264
        %v1266 = vsel %vm1265, %v1261, inf
        %1267 = vmin.xlane.f32.xlu0 %v1266
        %v1268 = vpop.xlane.xlu0 %1267
        %v1269 = vcvt.f32.s32 %v1268
        %v1270 = vcvt.f32.s32 %v1264
        %v1271 = vshll.u32 %v1270, 16
        %v1272 = vadd.s32 %v1271, %v1269
        %vm1273 = vcmp.eq.s32.totalorder %v351, 7
        %v1274 = vsel %vm1273, %v1183, %v1157
        %v1275 = vsel %vm1273, %v1186, %v1158
        %v1276 = vsel %vm1273, %v1189, %v1159
        %v1277 = vsel %vm1273, %v1192, %v1160
        %v1278 = vsel %vm1273, %v1224, %v1161
        %v1279 = vsel %vm1273, %v1240, %v1162
        %v1280 = vsel %vm1273, %v1256, %v1163
        %v1281 = vsel %vm1273, %v1272, %v1164
        %1282 = vst [vmem:[#allocation2] sm:$0xff] %v1274
        %1283 = vst [vmem:[#allocation2 + $0x8] sm:$0xff] %v1275
        %1284 = vst [vmem:[#allocation2 + $0x10] sm:$0xff] %v1276
        %1285 = vst [vmem:[#allocation2 + $0x18] sm:$0xff] %v1277
        %1286 = vst [vmem:[#allocation3] sm:$0xff] %v1278
        %1287 = vst [vmem:[#allocation3 + $0x8] sm:$0xff] %v1279
        %1288 = vst [vmem:[#allocation3 + $0x10] sm:$0xff] %v1280
        %1289 = vst [vmem:[#allocation3 + $0x18] sm:$0xff] %v1281
        // Predicated region
        $region37: #{tpu_custom_call.1} parent=31 // pred_check
          %p1290 = pneg %p215
        $region38: #{tpu_custom_call.1} parent=31 // pred_check_branch
          %1292 = sbr.rel (%p1290) target = $region40
        $region39: #{tpu_custom_call.1} parent=31 // pred_region
          %1293 = vst [vmem:[%s200] sm:$0xff] %v1278
          %1294 = vst [vmem:[%s200 + $0x8] sm:$0xff] %v1279
          %1295 = vst [vmem:[%s200 + $0x10] sm:$0xff] %v1280
          %1296 = vst [vmem:[%s200 + $0x18] sm:$0xff] %v1281
        $region40: #{tpu_custom_call.1} parent=31 // pred_fallthru
          _
        %s1297 = sand.u32 %s115, 1
        %s1298 = scalar_lea.sflag [#allocation5], %s1297
        %s1299 = sand.u32 %s115, 1
        %s1300 = smul.addr %s1299, 32
        %s1301 = scalar_lea.vmem [#allocation4], %s1300
        // Predicated region
        $region41: #{tpu_custom_call.1} parent=31 // pred_check
          %p1302 = pneg %p125
        $region42: #{tpu_custom_call.1} parent=31 // pred_check_branch
          %1304 = sbr.rel (%p1302) target = $region44
        $region43: #{tpu_custom_call.1} parent=31 // pred_region
          %s1305 = smul.u32 4, %s21
          %s1307 = ssub.s32 512, 512
          %1308 = vsyncadd %s1298, %s1307
          %s1309 = smul.addr %s1305, 128
          %s1310 = scalar_lea.hbm %s3, %s1309
          %s1311 = sshll.u32 %s1301, 4
          %s1312 = int_to_ptr.vmem [resolvable:$true] %s1311
          %1317 = dma.vmem_to_hbm [thread:$0]  %s1312, 512, %s1310, %s1298, 128, 128, 8
        $region44: #{tpu_custom_call.1} parent=31 // pred_fallthru
          _
      $region32: #{tpu_custom_call.1} parent=5 // pred_fallthru
        _
      %p1318 = scmp.le.s32.totalorder 2, %s12
      // Predicated region
      $region45: #{tpu_custom_call.1} parent=5 // pred_check
        %p1319 = pneg %p1318
      $region46: #{tpu_custom_call.1} parent=5 // pred_check_branch
        %1321 = sbr.rel (%p1319) target = $region48
      $region47: #{tpu_custom_call.1} parent=5 // pred_region
        %s1322 = ssub.s32 %s12, 2
        // Predicated region
        $region49: #{tpu_custom_call.1} parent=47 // pred_check
          %p1323 = pneg %p131
        $region50: #{tpu_custom_call.1} parent=47 // pred_check_branch
          %1325 = sbr.rel (%p1323) target = $region52
        $region51: #{tpu_custom_call.1} parent=47 // pred_region
          %s1326 = sand.u32 %s116, 1
          %s1327 = scalar_lea.sflag [#allocation5], %s1326
          %s1328 = sand.u32 %s116, 1
          %s1329 = smul.addr %s1328, 32
          %s1330 = scalar_lea.vmem [#allocation4], %s1329
          %1331 = dma.done %s1327, 512
        $region52: #{tpu_custom_call.1} parent=47 // pred_fallthru
          _
      $region48: #{tpu_custom_call.1} parent=5 // pred_fallthru
        _
    $region6: #{tpu_custom_call.1} parent=1 // loop_footer
      %s16 = sadd.s32 1, %s12
    $region7: #{tpu_custom_call.1} parent=1 // loop_footer_branch
      %11 = sbr.rel target = $region3
    $region8: #{tpu_custom_call.1} parent=1 // loop_exit
      _
    %1332 = vsyncpa [#allocation5], 1
    %s1333 = scalar_lea.sflag [#allocation5], 1
    %1334 = vsyncpa %s1333, 1

</llo_original>
